<compile_context>
chip_gen: v5e
topology: v5e:2x2
jax: 0.10.0
libtpu: 0.0.40
codegen_flags: <defaults>
</compile_context>

<pallas_src>
import functools

import numpy as np
import jax
import jax.numpy as jnp
from jax.experimental import pallas as pl
from jax.experimental.pallas import tpu as pltpu


def _convt_kernel(w_ref, x_ref, o_ref, *, K, Cout, Hm, Wm):
    """One batch of ConvTranspose2d (reference semantics) per grid step.

    w_ref: SMEM (K*K*Cout*Cout + 1,) f32
           w_ref[((kh*K + kw)*Cout + c)*Cout + t] = kernel[t, c, kh, kw]
           w_ref[-1] = sum(bias[:Cout])
    x_ref: VMEM (1, Cout, H, W) f32    -- one batch, only the Cout used channels
    o_ref: VMEM (1, Cout, H_out, W_out) f32
    """
    H_out, W_out = o_ref.shape[2], o_ref.shape[3]
    n_w = K * K * Cout * Cout
    sum_b = w_ref[n_w]

    # Bias: output pixel (oh, ow) receives bias[t] once per window covering it,
    # summed over t  ->  sum(bias[:Cout]) * count_h(oh) * count_w(ow).
    oh = jax.lax.broadcasted_iota(jnp.int32, (H_out, W_out), 0)
    ow = jax.lax.broadcasted_iota(jnp.int32, (H_out, W_out), 1)
    cnt_h = jnp.maximum(jnp.minimum(oh, Hm - 1) - jnp.maximum(oh - (K - 1), 0) + 1, 0)
    cnt_w = jnp.maximum(jnp.minimum(ow, Wm - 1) - jnp.maximum(ow - (K - 1), 0) + 1, 0)
    bias_plane = sum_b * (cnt_h * cnt_w).astype(jnp.float32)
    for c in range(Cout):
        o_ref[0, c] = bias_plane

    # Overlap-add of the K*K taps, entirely in VMEM (no im2col tensor).
    xplanes = [x_ref[0, t, :Hm, :Wm] for t in range(Cout)]   # each (Hm, Wm)
    for kh in range(K):
        for kw in range(K):
            for c in range(Cout):
                base = ((kh * K + kw) * Cout + c) * Cout
                part = w_ref[base] * xplanes[0]
                for t in range(1, Cout):
                    part = part + w_ref[base + t] * xplanes[t]
                o_ref[0, c, kh:kh + Hm, kw:kw + Wm] += part


def conv_transpose2d_forward(x, kernel, bias, stride):
    """Pallas implementation of the reference ConvTranspose2d.forward.

    x:      (B, Cin, H, W)            (Cin >= Cout, as the reference loops require)
    kernel: (Cin, Cout, K, K)
    bias:   (Cout + 1,)               (only bias[:Cout] is read, like the reference)
    returns (B, Cout, (H-1)*stride, (W-1)*stride) float32

    Like the reference, stride only sets the output size; the KxK windows are
    placed at (h, w), not (h*stride, w*stride), and only x[:, :Cout] is used.
    """
    B, Cin, H, W = x.shape
    _, Cout, K, _ = kernel.shape
    Hm, Wm = H - 1, W - 1
    H_out, W_out = Hm * stride, Wm * stride

    if Cin < Cout:
        raise ValueError("reference semantics index x[:, t] for t < out_channels")
    if H_out < Hm + K - 1 or W_out < Wm + K - 1:
        # The reference itself errors here (clipped-window shape mismatch).
        raise ValueError("window adds would clip; reference forward is undefined")

    # Tiny glue: flattened weights + summed bias -> SMEM scalars.
    wflat = jnp.transpose(kernel[:Cout].astype(jnp.float32), (2, 3, 1, 0)).reshape(-1)
    wvec = jnp.concatenate([wflat, jnp.sum(bias[:Cout].astype(jnp.float32))[None]])

    kfn = functools.partial(_convt_kernel, K=K, Cout=Cout, Hm=Hm, Wm=Wm)

    cost = pl.CostEstimate(
        flops=int(2 * B * K * K * Cout * Cout * Hm * Wm),
        transcendentals=0,
        bytes_accessed=int(4 * (B * Cout * H * W + B * Cout * H_out * W_out + wvec.size)),
    )

    return pl.pallas_call(
        kfn,
        out_shape=jax.ShapeDtypeStruct((B, Cout, H_out, W_out), jnp.float32),
        grid_spec=pltpu.PrefetchScalarGridSpec(
            num_scalar_prefetch=0,
            grid=(B,),
            in_specs=[
                pl.BlockSpec(memory_space=pltpu.MemorySpace.SMEM),       # weights + bias (resident)
                pl.BlockSpec((1, Cout, H, W), lambda b: (b, 0, 0, 0)),   # one batch, used channels only
            ],
            out_specs=pl.BlockSpec((1, Cout, H_out, W_out), lambda b: (b, 0, 0, 0)),
        ),
        compiler_params=pltpu.CompilerParams(
            dimension_semantics=("parallel",),      # batches are independent
            vmem_limit_bytes=32 * 1024 * 1024,      # safe on v5e/v6e/v7x; working set is tens of KiB
        ),
        cost_estimate=cost,
    )(wvec, x.astype(jnp.float32))


def reference_forward(x, kernel, bias, stride):
    """Literal (vectorized-over-batch) transcription of the PyTorch loops."""
    B, T, H, W = x.shape
    _, Cout, K, _ = kernel.shape
    H_out, W_out = (H - 1) * stride, (W - 1) * stride
    out = jnp.zeros((B, Cout, H_out, W_out), jnp.float32)
    for t in range(Cout):
        for h in range(H - 1):
            for w in range(W - 1):
                z = x[:, t, h, w][:, None, None, None] * kernel[t][None] + bias[t]
                out = out.at[:, :, h:h + K, w:w + K].add(z)
    return out


if __name__ == "__main__":
    B, Cin, Cout, K, stride = 2, 4, 3, 3, 2
    H = W = 16  # (H-1)*stride >= (H-1)+K-1, so the reference's window adds never clip

    key = jax.random.PRNGKey(0)
    kx, kk, kb = jax.random.split(key, 3)
    x = jax.random.normal(kx, (B, Cin, H, W), jnp.float32)
    kernel = jax.random.normal(kk, (Cin, Cout, K, K), jnp.float32)
    bias = jax.random.normal(kb, (Cout + 1,), jnp.float32)

    fwd = jax.jit(conv_transpose2d_forward, static_argnames=("stride",))
    out = jax.block_until_ready(fwd(x, kernel, bias, stride=stride))

    ref = reference_forward(x, kernel, bias, stride)
    np.testing.assert_allclose(np.asarray(out), np.asarray(ref), rtol=1e-4, atol=1e-4)
    print("KERNEL_OK")
</pallas_src>

<mosaic_0001>
module attributes {stable_mosaic.version = 11 : i64} {
  func.func @_convt_kernel(%arg0: i32, %arg1: memref<82xf32, #tpu.memory_space<smem>>, %arg2: memref<1x3x16x16xf32, #tpu.memory_space<vmem>>, %arg3: memref<1x3x30x30xf32, #tpu.memory_space<vmem>>) attributes {dimension_semantics = [#tpu.dimension_semantics<parallel>], iteration_bounds = array<i64: 2>, scalar_prefetch = 0 : i64, scratch_operands = 0 : i64, tpu.core_type = #tpu.core_type<tc>, window_params = [{transform_indices = @transform_0, window_bounds = array<i64: 82>}, {transform_indices = @transform_1, window_bounds = array<i64: 1, 3, 16, 16>}, {transform_indices = @transform_2, window_bounds = array<i64: 1, 3, 30, 30>}]} {
    %c81 = arith.constant 81 : index
    %0 = memref.load %arg1[%c81] : memref<82xf32, #tpu.memory_space<smem>>
    %1 = tpu.iota {dimensions = array<i32: 0>} : vector<30x30xi32>
    %2 = tpu.iota {dimensions = array<i32: 1>} : vector<30x30xi32>
    %c14_i32 = arith.constant 14 : i32
    %3 = vector.broadcast %c14_i32 : i32 to vector<30x30xi32>
    %4 = arith.minsi %1, %3 : vector<30x30xi32>
    %c2_i32 = arith.constant 2 : i32
    %5 = vector.broadcast %c2_i32 : i32 to vector<30x30xi32>
    %6 = arith.subi %1, %5 : vector<30x30xi32>
    %c0_i32 = arith.constant 0 : i32
    %7 = vector.broadcast %c0_i32 : i32 to vector<30x30xi32>
    %8 = arith.maxsi %6, %7 : vector<30x30xi32>
    %9 = arith.subi %4, %8 : vector<30x30xi32>
    %c1_i32 = arith.constant 1 : i32
    %10 = vector.broadcast %c1_i32 : i32 to vector<30x30xi32>
    %11 = arith.addi %9, %10 : vector<30x30xi32>
    %c0_i32_0 = arith.constant 0 : i32
    %12 = vector.broadcast %c0_i32_0 : i32 to vector<30x30xi32>
    %13 = arith.maxsi %11, %12 : vector<30x30xi32>
    %c14_i32_1 = arith.constant 14 : i32
    %14 = vector.broadcast %c14_i32_1 : i32 to vector<30x30xi32>
    %15 = arith.minsi %2, %14 : vector<30x30xi32>
    %c2_i32_2 = arith.constant 2 : i32
    %16 = vector.broadcast %c2_i32_2 : i32 to vector<30x30xi32>
    %17 = arith.subi %2, %16 : vector<30x30xi32>
    %c0_i32_3 = arith.constant 0 : i32
    %18 = vector.broadcast %c0_i32_3 : i32 to vector<30x30xi32>
    %19 = arith.maxsi %17, %18 : vector<30x30xi32>
    %20 = arith.subi %15, %19 : vector<30x30xi32>
    %c1_i32_4 = arith.constant 1 : i32
    %21 = vector.broadcast %c1_i32_4 : i32 to vector<30x30xi32>
    %22 = arith.addi %20, %21 : vector<30x30xi32>
    %c0_i32_5 = arith.constant 0 : i32
    %23 = vector.broadcast %c0_i32_5 : i32 to vector<30x30xi32>
    %24 = arith.maxsi %22, %23 : vector<30x30xi32>
    %25 = arith.muli %13, %24 : vector<30x30xi32>
    %26 = arith.sitofp %25 : vector<30x30xi32> to vector<30x30xf32>
    %27 = vector.broadcast %0 : f32 to vector<30x30xf32>
    %28 = arith.mulf %27, %26 : vector<30x30xf32>
    %c0 = arith.constant 0 : index
    %c0_6 = arith.constant 0 : index
    %c0_7 = arith.constant 0 : index
    %c0_8 = arith.constant 0 : index
    %29 = vector.load %arg3[%c0, %c0_6, %c0_7, %c0_8] : memref<1x3x30x30xf32, #tpu.memory_space<vmem>>, vector<1x1x30x30xf32>
    %30 = vector.shape_cast %29 : vector<1x1x30x30xf32> to vector<30x30xf32>
    %31 = vector.shape_cast %28 : vector<30x30xf32> to vector<1x1x30x30xf32>
    tpu.vector_store %arg3[%c0, %c0_6, %c0_7, %c0_8], %31 {strides = array<i32>} : memref<1x3x30x30xf32, #tpu.memory_space<vmem>>, vector<1x1x30x30xf32>,
    %c0_9 = arith.constant 0 : index
    %c1 = arith.constant 1 : index
    %c0_10 = arith.constant 0 : index
    %c0_11 = arith.constant 0 : index
    %32 = vector.load %arg3[%c0_9, %c1, %c0_10, %c0_11] : memref<1x3x30x30xf32, #tpu.memory_space<vmem>>, vector<1x1x30x30xf32>
    %33 = vector.shape_cast %32 : vector<1x1x30x30xf32> to vector<30x30xf32>
    %34 = vector.shape_cast %28 : vector<30x30xf32> to vector<1x1x30x30xf32>
    tpu.vector_store %arg3[%c0_9, %c1, %c0_10, %c0_11], %34 {strides = array<i32>} : memref<1x3x30x30xf32, #tpu.memory_space<vmem>>, vector<1x1x30x30xf32>,
    %c0_12 = arith.constant 0 : index
    %c2 = arith.constant 2 : index
    %c0_13 = arith.constant 0 : index
    %c0_14 = arith.constant 0 : index
    %35 = vector.load %arg3[%c0_12, %c2, %c0_13, %c0_14] : memref<1x3x30x30xf32, #tpu.memory_space<vmem>>, vector<1x1x30x30xf32>
    %36 = vector.shape_cast %35 : vector<1x1x30x30xf32> to vector<30x30xf32>
    %37 = vector.shape_cast %28 : vector<30x30xf32> to vector<1x1x30x30xf32>
    tpu.vector_store %arg3[%c0_12, %c2, %c0_13, %c0_14], %37 {strides = array<i32>} : memref<1x3x30x30xf32, #tpu.memory_space<vmem>>, vector<1x1x30x30xf32>,
    %c0_15 = arith.constant 0 : index
    %c0_16 = arith.constant 0 : index
    %c0_17 = arith.constant 0 : index
    %c0_18 = arith.constant 0 : index
    %38 = vector.load %arg2[%c0_15, %c0_16, %c0_17, %c0_18] : memref<1x3x16x16xf32, #tpu.memory_space<vmem>>, vector<1x1x15x15xf32>
    %39 = vector.shape_cast %38 : vector<1x1x15x15xf32> to vector<15x15xf32>
    %c0_19 = arith.constant 0 : index
    %c1_20 = arith.constant 1 : index
    %c0_21 = arith.constant 0 : index
    %c0_22 = arith.constant 0 : index
    %40 = vector.load %arg2[%c0_19, %c1_20, %c0_21, %c0_22] : memref<1x3x16x16xf32, #tpu.memory_space<vmem>>, vector<1x1x15x15xf32>
    %41 = vector.shape_cast %40 : vector<1x1x15x15xf32> to vector<15x15xf32>
    %c0_23 = arith.constant 0 : index
    %c2_24 = arith.constant 2 : index
    %c0_25 = arith.constant 0 : index
    %c0_26 = arith.constant 0 : index
    %42 = vector.load %arg2[%c0_23, %c2_24, %c0_25, %c0_26] : memref<1x3x16x16xf32, #tpu.memory_space<vmem>>, vector<1x1x15x15xf32>
    %43 = vector.shape_cast %42 : vector<1x1x15x15xf32> to vector<15x15xf32>
    %c0_27 = arith.constant 0 : index
    %44 = memref.load %arg1[%c0_27] : memref<82xf32, #tpu.memory_space<smem>>
    %45 = vector.broadcast %44 : f32 to vector<15x15xf32>
    %46 = arith.mulf %45, %39 : vector<15x15xf32>
    %c1_28 = arith.constant 1 : index
    %47 = memref.load %arg1[%c1_28] : memref<82xf32, #tpu.memory_space<smem>>
    %48 = vector.broadcast %47 : f32 to vector<15x15xf32>
    %49 = arith.mulf %48, %41 : vector<15x15xf32>
    %50 = arith.addf %46, %49 : vector<15x15xf32>
    %c2_29 = arith.constant 2 : index
    %51 = memref.load %arg1[%c2_29] : memref<82xf32, #tpu.memory_space<smem>>
    %52 = vector.broadcast %51 : f32 to vector<15x15xf32>
    %53 = arith.mulf %52, %43 : vector<15x15xf32>
    %54 = arith.addf %50, %53 : vector<15x15xf32>
    %c0_30 = arith.constant 0 : index
    %c0_31 = arith.constant 0 : index
    %c0_32 = arith.constant 0 : index
    %c0_33 = arith.constant 0 : index
    %55 = vector.load %arg3[%c0_30, %c0_31, %c0_32, %c0_33] : memref<1x3x30x30xf32, #tpu.memory_space<vmem>>, vector<1x1x15x15xf32>
    %56 = vector.shape_cast %55 : vector<1x1x15x15xf32> to vector<15x15xf32>
    %57 = arith.addf %56, %54 : vector<15x15xf32>
    %c0_34 = arith.constant 0 : index
    %c0_35 = arith.constant 0 : index
    %c0_36 = arith.constant 0 : index
    %c0_37 = arith.constant 0 : index
    %58 = vector.load %arg3[%c0_34, %c0_35, %c0_36, %c0_37] : memref<1x3x30x30xf32, #tpu.memory_space<vmem>>, vector<1x1x15x15xf32>
    %59 = vector.shape_cast %58 : vector<1x1x15x15xf32> to vector<15x15xf32>
    %60 = vector.shape_cast %57 : vector<15x15xf32> to vector<1x1x15x15xf32>
    tpu.vector_store %arg3[%c0_34, %c0_35, %c0_36, %c0_37], %60 {strides = array<i32>} : memref<1x3x30x30xf32, #tpu.memory_space<vmem>>, vector<1x1x15x15xf32>,
    %c3 = arith.constant 3 : index
    %61 = memref.load %arg1[%c3] : memref<82xf32, #tpu.memory_space<smem>>
    %62 = vector.broadcast %61 : f32 to vector<15x15xf32>
    %63 = arith.mulf %62, %39 : vector<15x15xf32>
    %c4 = arith.constant 4 : index
    %64 = memref.load %arg1[%c4] : memref<82xf32, #tpu.memory_space<smem>>
    %65 = vector.broadcast %64 : f32 to vector<15x15xf32>
    %66 = arith.mulf %65, %41 : vector<15x15xf32>
    %67 = arith.addf %63, %66 : vector<15x15xf32>
    %c5 = arith.constant 5 : index
    %68 = memref.load %arg1[%c5] : memref<82xf32, #tpu.memory_space<smem>>
    %69 = vector.broadcast %68 : f32 to vector<15x15xf32>
    %70 = arith.mulf %69, %43 : vector<15x15xf32>
    %71 = arith.addf %67, %70 : vector<15x15xf32>
    %c0_38 = arith.constant 0 : index
    %c1_39 = arith.constant 1 : index
    %c0_40 = arith.constant 0 : index
    %c0_41 = arith.constant 0 : index
    %72 = vector.load %arg3[%c0_38, %c1_39, %c0_40, %c0_41] : memref<1x3x30x30xf32, #tpu.memory_space<vmem>>, vector<1x1x15x15xf32>
    %73 = vector.shape_cast %72 : vector<1x1x15x15xf32> to vector<15x15xf32>
    %74 = arith.addf %73, %71 : vector<15x15xf32>
    %c0_42 = arith.constant 0 : index
    %c1_43 = arith.constant 1 : index
    %c0_44 = arith.constant 0 : index
    %c0_45 = arith.constant 0 : index
    %75 = vector.load %arg3[%c0_42, %c1_43, %c0_44, %c0_45] : memref<1x3x30x30xf32, #tpu.memory_space<vmem>>, vector<1x1x15x15xf32>
    %76 = vector.shape_cast %75 : vector<1x1x15x15xf32> to vector<15x15xf32>
    %77 = vector.shape_cast %74 : vector<15x15xf32> to vector<1x1x15x15xf32>
    tpu.vector_store %arg3[%c0_42, %c1_43, %c0_44, %c0_45], %77 {strides = array<i32>} : memref<1x3x30x30xf32, #tpu.memory_space<vmem>>, vector<1x1x15x15xf32>,
    %c6 = arith.constant 6 : index
    %78 = memref.load %arg1[%c6] : memref<82xf32, #tpu.memory_space<smem>>
    %79 = vector.broadcast %78 : f32 to vector<15x15xf32>
    %80 = arith.mulf %79, %39 : vector<15x15xf32>
    %c7 = arith.constant 7 : index
    %81 = memref.load %arg1[%c7] : memref<82xf32, #tpu.memory_space<smem>>
    %82 = vector.broadcast %81 : f32 to vector<15x15xf32>
    %83 = arith.mulf %82, %41 : vector<15x15xf32>
    %84 = arith.addf %80, %83 : vector<15x15xf32>
    %c8 = arith.constant 8 : index
    %85 = memref.load %arg1[%c8] : memref<82xf32, #tpu.memory_space<smem>>
    %86 = vector.broadcast %85 : f32 to vector<15x15xf32>
    %87 = arith.mulf %86, %43 : vector<15x15xf32>
    %88 = arith.addf %84, %87 : vector<15x15xf32>
    %c0_46 = arith.constant 0 : index
    %c2_47 = arith.constant 2 : index
    %c0_48 = arith.constant 0 : index
    %c0_49 = arith.constant 0 : index
    %89 = vector.load %arg3[%c0_46, %c2_47, %c0_48, %c0_49] : memref<1x3x30x30xf32, #tpu.memory_space<vmem>>, vector<1x1x15x15xf32>
    %90 = vector.shape_cast %89 : vector<1x1x15x15xf32> to vector<15x15xf32>
    %91 = arith.addf %90, %88 : vector<15x15xf32>
    %c0_50 = arith.constant 0 : index
    %c2_51 = arith.constant 2 : index
    %c0_52 = arith.constant 0 : index
    %c0_53 = arith.constant 0 : index
    %92 = vector.load %arg3[%c0_50, %c2_51, %c0_52, %c0_53] : memref<1x3x30x30xf32, #tpu.memory_space<vmem>>, vector<1x1x15x15xf32>
    %93 = vector.shape_cast %92 : vector<1x1x15x15xf32> to vector<15x15xf32>
    %94 = vector.shape_cast %91 : vector<15x15xf32> to vector<1x1x15x15xf32>
    tpu.vector_store %arg3[%c0_50, %c2_51, %c0_52, %c0_53], %94 {strides = array<i32>} : memref<1x3x30x30xf32, #tpu.memory_space<vmem>>, vector<1x1x15x15xf32>,
    %c9 = arith.constant 9 : index
    %95 = memref.load %arg1[%c9] : memref<82xf32, #tpu.memory_space<smem>>
    %96 = vector.broadcast %95 : f32 to vector<15x15xf32>
    %97 = arith.mulf %96, %39 : vector<15x15xf32>
    %c10 = arith.constant 10 : index
    %98 = memref.load %arg1[%c10] : memref<82xf32, #tpu.memory_space<smem>>
    %99 = vector.broadcast %98 : f32 to vector<15x15xf32>
    %100 = arith.mulf %99, %41 : vector<15x15xf32>
    %101 = arith.addf %97, %100 : vector<15x15xf32>
    %c11 = arith.constant 11 : index
    %102 = memref.load %arg1[%c11] : memref<82xf32, #tpu.memory_space<smem>>
    %103 = vector.broadcast %102 : f32 to vector<15x15xf32>
    %104 = arith.mulf %103, %43 : vector<15x15xf32>
    %105 = arith.addf %101, %104 : vector<15x15xf32>
    %c0_54 = arith.constant 0 : index
    %c0_55 = arith.constant 0 : index
    %c0_56 = arith.constant 0 : index
    %c1_57 = arith.constant 1 : index
    %106 = vector.load %arg3[%c0_54, %c0_55, %c0_56, %c1_57] : memref<1x3x30x30xf32, #tpu.memory_space<vmem>>, vector<1x1x15x15xf32>
    %107 = vector.shape_cast %106 : vector<1x1x15x15xf32> to vector<15x15xf32>
    %108 = arith.addf %107, %105 : vector<15x15xf32>
    %c0_58 = arith.constant 0 : index
    %c0_59 = arith.constant 0 : index
    %c0_60 = arith.constant 0 : index
    %c1_61 = arith.constant 1 : index
    %109 = vector.load %arg3[%c0_58, %c0_59, %c0_60, %c1_61] : memref<1x3x30x30xf32, #tpu.memory_space<vmem>>, vector<1x1x15x15xf32>
    %110 = vector.shape_cast %109 : vector<1x1x15x15xf32> to vector<15x15xf32>
    %111 = vector.shape_cast %108 : vector<15x15xf32> to vector<1x1x15x15xf32>
    tpu.vector_store %arg3[%c0_58, %c0_59, %c0_60, %c1_61], %111 {strides = array<i32>} : memref<1x3x30x30xf32, #tpu.memory_space<vmem>>, vector<1x1x15x15xf32>,
    %c12 = arith.constant 12 : index
    %112 = memref.load %arg1[%c12] : memref<82xf32, #tpu.memory_space<smem>>
    %113 = vector.broadcast %112 : f32 to vector<15x15xf32>
    %114 = arith.mulf %113, %39 : vector<15x15xf32>
    %c13 = arith.constant 13 : index
    %115 = memref.load %arg1[%c13] : memref<82xf32, #tpu.memory_space<smem>>
    %116 = vector.broadcast %115 : f32 to vector<15x15xf32>
    %117 = arith.mulf %116, %41 : vector<15x15xf32>
    %118 = arith.addf %114, %117 : vector<15x15xf32>
    %c14 = arith.constant 14 : index
    %119 = memref.load %arg1[%c14] : memref<82xf32, #tpu.memory_space<smem>>
    %120 = vector.broadcast %119 : f32 to vector<15x15xf32>
    %121 = arith.mulf %120, %43 : vector<15x15xf32>
    %122 = arith.addf %118, %121 : vector<15x15xf32>
    %c0_62 = arith.constant 0 : index
    %c1_63 = arith.constant 1 : index
    %c0_64 = arith.constant 0 : index
    %c1_65 = arith.constant 1 : index
    %123 = vector.load %arg3[%c0_62, %c1_63, %c0_64, %c1_65] : memref<1x3x30x30xf32, #tpu.memory_space<vmem>>, vector<1x1x15x15xf32>
    %124 = vector.shape_cast %123 : vector<1x1x15x15xf32> to vector<15x15xf32>
    %125 = arith.addf %124, %122 : vector<15x15xf32>
    %c0_66 = arith.constant 0 : index
    %c1_67 = arith.constant 1 : index
    %c0_68 = arith.constant 0 : index
    %c1_69 = arith.constant 1 : index
    %126 = vector.load %arg3[%c0_66, %c1_67, %c0_68, %c1_69] : memref<1x3x30x30xf32, #tpu.memory_space<vmem>>, vector<1x1x15x15xf32>
    %127 = vector.shape_cast %126 : vector<1x1x15x15xf32> to vector<15x15xf32>
    %128 = vector.shape_cast %125 : vector<15x15xf32> to vector<1x1x15x15xf32>
    tpu.vector_store %arg3[%c0_66, %c1_67, %c0_68, %c1_69], %128 {strides = array<i32>} : memref<1x3x30x30xf32, #tpu.memory_space<vmem>>, vector<1x1x15x15xf32>,
    %c15 = arith.constant 15 : index
    %129 = memref.load %arg1[%c15] : memref<82xf32, #tpu.memory_space<smem>>
    %130 = vector.broadcast %129 : f32 to vector<15x15xf32>
    %131 = arith.mulf %130, %39 : vector<15x15xf32>
    %c16 = arith.constant 16 : index
    %132 = memref.load %arg1[%c16] : memref<82xf32, #tpu.memory_space<smem>>
    %133 = vector.broadcast %132 : f32 to vector<15x15xf32>
    %134 = arith.mulf %133, %41 : vector<15x15xf32>
    %135 = arith.addf %131, %134 : vector<15x15xf32>
    %c17 = arith.constant 17 : index
    %136 = memref.load %arg1[%c17] : memref<82xf32, #tpu.memory_space<smem>>
    %137 = vector.broadcast %136 : f32 to vector<15x15xf32>
    %138 = arith.mulf %137, %43 : vector<15x15xf32>
    %139 = arith.addf %135, %138 : vector<15x15xf32>
    %c0_70 = arith.constant 0 : index
    %c2_71 = arith.constant 2 : index
    %c0_72 = arith.constant 0 : index
    %c1_73 = arith.constant 1 : index
    %140 = vector.load %arg3[%c0_70, %c2_71, %c0_72, %c1_73] : memref<1x3x30x30xf32, #tpu.memory_space<vmem>>, vector<1x1x15x15xf32>
    %141 = vector.shape_cast %140 : vector<1x1x15x15xf32> to vector<15x15xf32>
    %142 = arith.addf %141, %139 : vector<15x15xf32>
    %c0_74 = arith.constant 0 : index
    %c2_75 = arith.constant 2 : index
    %c0_76 = arith.constant 0 : index
    %c1_77 = arith.constant 1 : index
    %143 = vector.load %arg3[%c0_74, %c2_75, %c0_76, %c1_77] : memref<1x3x30x30xf32, #tpu.memory_space<vmem>>, vector<1x1x15x15xf32>
    %144 = vector.shape_cast %143 : vector<1x1x15x15xf32> to vector<15x15xf32>
    %145 = vector.shape_cast %142 : vector<15x15xf32> to vector<1x1x15x15xf32>
    tpu.vector_store %arg3[%c0_74, %c2_75, %c0_76, %c1_77], %145 {strides = array<i32>} : memref<1x3x30x30xf32, #tpu.memory_space<vmem>>, vector<1x1x15x15xf32>,
    %c18 = arith.constant 18 : index
    %146 = memref.load %arg1[%c18] : memref<82xf32, #tpu.memory_space<smem>>
    %147 = vector.broadcast %146 : f32 to vector<15x15xf32>
    %148 = arith.mulf %147, %39 : vector<15x15xf32>
    %c19 = arith.constant 19 : index
    %149 = memref.load %arg1[%c19] : memref<82xf32, #tpu.memory_space<smem>>
    %150 = vector.broadcast %149 : f32 to vector<15x15xf32>
    %151 = arith.mulf %150, %41 : vector<15x15xf32>
    %152 = arith.addf %148, %151 : vector<15x15xf32>
    %c20 = arith.constant 20 : index
    %153 = memref.load %arg1[%c20] : memref<82xf32, #tpu.memory_space<smem>>
    %154 = vector.broadcast %153 : f32 to vector<15x15xf32>
    %155 = arith.mulf %154, %43 : vector<15x15xf32>
    %156 = arith.addf %152, %155 : vector<15x15xf32>
    %c0_78 = arith.constant 0 : index
    %c0_79 = arith.constant 0 : index
    %c0_80 = arith.constant 0 : index
    %c2_81 = arith.constant 2 : index
    %157 = vector.load %arg3[%c0_78, %c0_79, %c0_80, %c2_81] : memref<1x3x30x30xf32, #tpu.memory_space<vmem>>, vector<1x1x15x15xf32>
    %158 = vector.shape_cast %157 : vector<1x1x15x15xf32> to vector<15x15xf32>
    %159 = arith.addf %158, %156 : vector<15x15xf32>
    %c0_82 = arith.constant 0 : index
    %c0_83 = arith.constant 0 : index
    %c0_84 = arith.constant 0 : index
    %c2_85 = arith.constant 2 : index
    %160 = vector.load %arg3[%c0_82, %c0_83, %c0_84, %c2_85] : memref<1x3x30x30xf32, #tpu.memory_space<vmem>>, vector<1x1x15x15xf32>
    %161 = vector.shape_cast %160 : vector<1x1x15x15xf32> to vector<15x15xf32>
    %162 = vector.shape_cast %159 : vector<15x15xf32> to vector<1x1x15x15xf32>
    tpu.vector_store %arg3[%c0_82, %c0_83, %c0_84, %c2_85], %162 {strides = array<i32>} : memref<1x3x30x30xf32, #tpu.memory_space<vmem>>, vector<1x1x15x15xf32>,
    %c21 = arith.constant 21 : index
    %163 = memref.load %arg1[%c21] : memref<82xf32, #tpu.memory_space<smem>>
    %164 = vector.broadcast %163 : f32 to vector<15x15xf32>
    %165 = arith.mulf %164, %39 : vector<15x15xf32>
    %c22 = arith.constant 22 : index
    %166 = memref.load %arg1[%c22] : memref<82xf32, #tpu.memory_space<smem>>
    %167 = vector.broadcast %166 : f32 to vector<15x15xf32>
    %168 = arith.mulf %167, %41 : vector<15x15xf32>
    %169 = arith.addf %165, %168 : vector<15x15xf32>
    %c23 = arith.constant 23 : index
    %170 = memref.load %arg1[%c23] : memref<82xf32, #tpu.memory_space<smem>>
    %171 = vector.broadcast %170 : f32 to vector<15x15xf32>
    %172 = arith.mulf %171, %43 : vector<15x15xf32>
    %173 = arith.addf %169, %172 : vector<15x15xf32>
    %c0_86 = arith.constant 0 : index
    %c1_87 = arith.constant 1 : index
    %c0_88 = arith.constant 0 : index
    %c2_89 = arith.constant 2 : index
    %174 = vector.load %arg3[%c0_86, %c1_87, %c0_88, %c2_89] : memref<1x3x30x30xf32, #tpu.memory_space<vmem>>, vector<1x1x15x15xf32>
    %175 = vector.shape_cast %174 : vector<1x1x15x15xf32> to vector<15x15xf32>
    %176 = arith.addf %175, %173 : vector<15x15xf32>
    %c0_90 = arith.constant 0 : index
    %c1_91 = arith.constant 1 : index
    %c0_92 = arith.constant 0 : index
    %c2_93 = arith.constant 2 : index
    %177 = vector.load %arg3[%c0_90, %c1_91, %c0_92, %c2_93] : memref<1x3x30x30xf32, #tpu.memory_space<vmem>>, vector<1x1x15x15xf32>
    %178 = vector.shape_cast %177 : vector<1x1x15x15xf32> to vector<15x15xf32>
    %179 = vector.shape_cast %176 : vector<15x15xf32> to vector<1x1x15x15xf32>
    tpu.vector_store %arg3[%c0_90, %c1_91, %c0_92, %c2_93], %179 {strides = array<i32>} : memref<1x3x30x30xf32, #tpu.memory_space<vmem>>, vector<1x1x15x15xf32>,
    %c24 = arith.constant 24 : index
    %180 = memref.load %arg1[%c24] : memref<82xf32, #tpu.memory_space<smem>>
    %181 = vector.broadcast %180 : f32 to vector<15x15xf32>
    %182 = arith.mulf %181, %39 : vector<15x15xf32>
    %c25 = arith.constant 25 : index
    %183 = memref.load %arg1[%c25] : memref<82xf32, #tpu.memory_space<smem>>
    %184 = vector.broadcast %183 : f32 to vector<15x15xf32>
    %185 = arith.mulf %184, %41 : vector<15x15xf32>
    %186 = arith.addf %182, %185 : vector<15x15xf32>
    %c26 = arith.constant 26 : index
    %187 = memref.load %arg1[%c26] : memref<82xf32, #tpu.memory_space<smem>>
    %188 = vector.broadcast %187 : f32 to vector<15x15xf32>
    %189 = arith.mulf %188, %43 : vector<15x15xf32>
    %190 = arith.addf %186, %189 : vector<15x15xf32>
    %c0_94 = arith.constant 0 : index
    %c2_95 = arith.constant 2 : index
    %c0_96 = arith.constant 0 : index
    %c2_97 = arith.constant 2 : index
    %191 = vector.load %arg3[%c0_94, %c2_95, %c0_96, %c2_97] : memref<1x3x30x30xf32, #tpu.memory_space<vmem>>, vector<1x1x15x15xf32>
    %192 = vector.shape_cast %191 : vector<1x1x15x15xf32> to vector<15x15xf32>
    %193 = arith.addf %192, %190 : vector<15x15xf32>
    %c0_98 = arith.constant 0 : index
    %c2_99 = arith.constant 2 : index
    %c0_100 = arith.constant 0 : index
    %c2_101 = arith.constant 2 : index
    %194 = vector.load %arg3[%c0_98, %c2_99, %c0_100, %c2_101] : memref<1x3x30x30xf32, #tpu.memory_space<vmem>>, vector<1x1x15x15xf32>
    %195 = vector.shape_cast %194 : vector<1x1x15x15xf32> to vector<15x15xf32>
    %196 = vector.shape_cast %193 : vector<15x15xf32> to vector<1x1x15x15xf32>
    tpu.vector_store %arg3[%c0_98, %c2_99, %c0_100, %c2_101], %196 {strides = array<i32>} : memref<1x3x30x30xf32, #tpu.memory_space<vmem>>, vector<1x1x15x15xf32>,
    %c27 = arith.constant 27 : index
    %197 = memref.load %arg1[%c27] : memref<82xf32, #tpu.memory_space<smem>>
    %198 = vector.broadcast %197 : f32 to vector<15x15xf32>
    %199 = arith.mulf %198, %39 : vector<15x15xf32>
    %c28 = arith.constant 28 : index
    %200 = memref.load %arg1[%c28] : memref<82xf32, #tpu.memory_space<smem>>
    %201 = vector.broadcast %200 : f32 to vector<15x15xf32>
    %202 = arith.mulf %201, %41 : vector<15x15xf32>
    %203 = arith.addf %199, %202 : vector<15x15xf32>
    %c29 = arith.constant 29 : index
    %204 = memref.load %arg1[%c29] : memref<82xf32, #tpu.memory_space<smem>>
    %205 = vector.broadcast %204 : f32 to vector<15x15xf32>
    %206 = arith.mulf %205, %43 : vector<15x15xf32>
    %207 = arith.addf %203, %206 : vector<15x15xf32>
    %c0_102 = arith.constant 0 : index
    %c0_103 = arith.constant 0 : index
    %c1_104 = arith.constant 1 : index
    %c0_105 = arith.constant 0 : index
    %208 = vector.load %arg3[%c0_102, %c0_103, %c1_104, %c0_105] : memref<1x3x30x30xf32, #tpu.memory_space<vmem>>, vector<1x1x15x15xf32>
    %209 = vector.shape_cast %208 : vector<1x1x15x15xf32> to vector<15x15xf32>
    %210 = arith.addf %209, %207 : vector<15x15xf32>
    %c0_106 = arith.constant 0 : index
    %c0_107 = arith.constant 0 : index
    %c1_108 = arith.constant 1 : index
    %c0_109 = arith.constant 0 : index
    %211 = vector.load %arg3[%c0_106, %c0_107, %c1_108, %c0_109] : memref<1x3x30x30xf32, #tpu.memory_space<vmem>>, vector<1x1x15x15xf32>
    %212 = vector.shape_cast %211 : vector<1x1x15x15xf32> to vector<15x15xf32>
    %213 = vector.shape_cast %210 : vector<15x15xf32> to vector<1x1x15x15xf32>
    tpu.vector_store %arg3[%c0_106, %c0_107, %c1_108, %c0_109], %213 {strides = array<i32>} : memref<1x3x30x30xf32, #tpu.memory_space<vmem>>, vector<1x1x15x15xf32>,
    %c30 = arith.constant 30 : index
    %214 = memref.load %arg1[%c30] : memref<82xf32, #tpu.memory_space<smem>>
    %215 = vector.broadcast %214 : f32 to vector<15x15xf32>
    %216 = arith.mulf %215, %39 : vector<15x15xf32>
    %c31 = arith.constant 31 : index
    %217 = memref.load %arg1[%c31] : memref<82xf32, #tpu.memory_space<smem>>
    %218 = vector.broadcast %217 : f32 to vector<15x15xf32>
    %219 = arith.mulf %218, %41 : vector<15x15xf32>
    %220 = arith.addf %216, %219 : vector<15x15xf32>
    %c32 = arith.constant 32 : index
    %221 = memref.load %arg1[%c32] : memref<82xf32, #tpu.memory_space<smem>>
    %222 = vector.broadcast %221 : f32 to vector<15x15xf32>
    %223 = arith.mulf %222, %43 : vector<15x15xf32>
    %224 = arith.addf %220, %223 : vector<15x15xf32>
    %c0_110 = arith.constant 0 : index
    %c1_111 = arith.constant 1 : index
    %c1_112 = arith.constant 1 : index
    %c0_113 = arith.constant 0 : index
    %225 = vector.load %arg3[%c0_110, %c1_111, %c1_112, %c0_113] : memref<1x3x30x30xf32, #tpu.memory_space<vmem>>, vector<1x1x15x15xf32>
    %226 = vector.shape_cast %225 : vector<1x1x15x15xf32> to vector<15x15xf32>
    %227 = arith.addf %226, %224 : vector<15x15xf32>
    %c0_114 = arith.constant 0 : index
    %c1_115 = arith.constant 1 : index
    %c1_116 = arith.constant 1 : index
    %c0_117 = arith.constant 0 : index
    %228 = vector.load %arg3[%c0_114, %c1_115, %c1_116, %c0_117] : memref<1x3x30x30xf32, #tpu.memory_space<vmem>>, vector<1x1x15x15xf32>
    %229 = vector.shape_cast %228 : vector<1x1x15x15xf32> to vector<15x15xf32>
    %230 = vector.shape_cast %227 : vector<15x15xf32> to vector<1x1x15x15xf32>
    tpu.vector_store %arg3[%c0_114, %c1_115, %c1_116, %c0_117], %230 {strides = array<i32>} : memref<1x3x30x30xf32, #tpu.memory_space<vmem>>, vector<1x1x15x15xf32>,
    %c33 = arith.constant 33 : index
    %231 = memref.load %arg1[%c33] : memref<82xf32, #tpu.memory_space<smem>>
    %232 = vector.broadcast %231 : f32 to vector<15x15xf32>
    %233 = arith.mulf %232, %39 : vector<15x15xf32>
    %c34 = arith.constant 34 : index
    %234 = memref.load %arg1[%c34] : memref<82xf32, #tpu.memory_space<smem>>
    %235 = vector.broadcast %234 : f32 to vector<15x15xf32>
    %236 = arith.mulf %235, %41 : vector<15x15xf32>
    %237 = arith.addf %233, %236 : vector<15x15xf32>
    %c35 = arith.constant 35 : index
    %238 = memref.load %arg1[%c35] : memref<82xf32, #tpu.memory_space<smem>>
    %239 = vector.broadcast %238 : f32 to vector<15x15xf32>
    %240 = arith.mulf %239, %43 : vector<15x15xf32>
    %241 = arith.addf %237, %240 : vector<15x15xf32>
    %c0_118 = arith.constant 0 : index
    %c2_119 = arith.constant 2 : index
    %c1_120 = arith.constant 1 : index
    %c0_121 = arith.constant 0 : index
    %242 = vector.load %arg3[%c0_118, %c2_119, %c1_120, %c0_121] : memref<1x3x30x30xf32, #tpu.memory_space<vmem>>, vector<1x1x15x15xf32>
    %243 = vector.shape_cast %242 : vector<1x1x15x15xf32> to vector<15x15xf32>
    %244 = arith.addf %243, %241 : vector<15x15xf32>
    %c0_122 = arith.constant 0 : index
    %c2_123 = arith.constant 2 : index
    %c1_124 = arith.constant 1 : index
    %c0_125 = arith.constant 0 : index
    %245 = vector.load %arg3[%c0_122, %c2_123, %c1_124, %c0_125] : memref<1x3x30x30xf32, #tpu.memory_space<vmem>>, vector<1x1x15x15xf32>
    %246 = vector.shape_cast %245 : vector<1x1x15x15xf32> to vector<15x15xf32>
    %247 = vector.shape_cast %244 : vector<15x15xf32> to vector<1x1x15x15xf32>
    tpu.vector_store %arg3[%c0_122, %c2_123, %c1_124, %c0_125], %247 {strides = array<i32>} : memref<1x3x30x30xf32, #tpu.memory_space<vmem>>, vector<1x1x15x15xf32>,
    %c36 = arith.constant 36 : index
    %248 = memref.load %arg1[%c36] : memref<82xf32, #tpu.memory_space<smem>>
    %249 = vector.broadcast %248 : f32 to vector<15x15xf32>
    %250 = arith.mulf %249, %39 : vector<15x15xf32>
    %c37 = arith.constant 37 : index
    %251 = memref.load %arg1[%c37] : memref<82xf32, #tpu.memory_space<smem>>
    %252 = vector.broadcast %251 : f32 to vector<15x15xf32>
    %253 = arith.mulf %252, %41 : vector<15x15xf32>
    %254 = arith.addf %250, %253 : vector<15x15xf32>
    %c38 = arith.constant 38 : index
    %255 = memref.load %arg1[%c38] : memref<82xf32, #tpu.memory_space<smem>>
    %256 = vector.broadcast %255 : f32 to vector<15x15xf32>
    %257 = arith.mulf %256, %43 : vector<15x15xf32>
    %258 = arith.addf %254, %257 : vector<15x15xf32>
    %c0_126 = arith.constant 0 : index
    %c0_127 = arith.constant 0 : index
    %c1_128 = arith.constant 1 : index
    %c1_129 = arith.constant 1 : index
    %259 = vector.load %arg3[%c0_126, %c0_127, %c1_128, %c1_129] : memref<1x3x30x30xf32, #tpu.memory_space<vmem>>, vector<1x1x15x15xf32>
    %260 = vector.shape_cast %259 : vector<1x1x15x15xf32> to vector<15x15xf32>
    %261 = arith.addf %260, %258 : vector<15x15xf32>
    %c0_130 = arith.constant 0 : index
    %c0_131 = arith.constant 0 : index
    %c1_132 = arith.constant 1 : index
    %c1_133 = arith.constant 1 : index
    %262 = vector.load %arg3[%c0_130, %c0_131, %c1_132, %c1_133] : memref<1x3x30x30xf32, #tpu.memory_space<vmem>>, vector<1x1x15x15xf32>
    %263 = vector.shape_cast %262 : vector<1x1x15x15xf32> to vector<15x15xf32>
    %264 = vector.shape_cast %261 : vector<15x15xf32> to vector<1x1x15x15xf32>
    tpu.vector_store %arg3[%c0_130, %c0_131, %c1_132, %c1_133], %264 {strides = array<i32>} : memref<1x3x30x30xf32, #tpu.memory_space<vmem>>, vector<1x1x15x15xf32>,
    %c39 = arith.constant 39 : index
    %265 = memref.load %arg1[%c39] : memref<82xf32, #tpu.memory_space<smem>>
    %266 = vector.broadcast %265 : f32 to vector<15x15xf32>
    %267 = arith.mulf %266, %39 : vector<15x15xf32>
    %c40 = arith.constant 40 : index
    %268 = memref.load %arg1[%c40] : memref<82xf32, #tpu.memory_space<smem>>
    %269 = vector.broadcast %268 : f32 to vector<15x15xf32>
    %270 = arith.mulf %269, %41 : vector<15x15xf32>
    %271 = arith.addf %267, %270 : vector<15x15xf32>
    %c41 = arith.constant 41 : index
    %272 = memref.load %arg1[%c41] : memref<82xf32, #tpu.memory_space<smem>>
    %273 = vector.broadcast %272 : f32 to vector<15x15xf32>
    %274 = arith.mulf %273, %43 : vector<15x15xf32>
    %275 = arith.addf %271, %274 : vector<15x15xf32>
    %c0_134 = arith.constant 0 : index
    %c1_135 = arith.constant 1 : index
    %c1_136 = arith.constant 1 : index
    %c1_137 = arith.constant 1 : index
    %276 = vector.load %arg3[%c0_134, %c1_135, %c1_136, %c1_137] : memref<1x3x30x30xf32, #tpu.memory_space<vmem>>, vector<1x1x15x15xf32>
    %277 = vector.shape_cast %276 : vector<1x1x15x15xf32> to vector<15x15xf32>
    %278 = arith.addf %277, %275 : vector<15x15xf32>
    %c0_138 = arith.constant 0 : index
    %c1_139 = arith.constant 1 : index
    %c1_140 = arith.constant 1 : index
    %c1_141 = arith.constant 1 : index
    %279 = vector.load %arg3[%c0_138, %c1_139, %c1_140, %c1_141] : memref<1x3x30x30xf32, #tpu.memory_space<vmem>>, vector<1x1x15x15xf32>
    %280 = vector.shape_cast %279 : vector<1x1x15x15xf32> to vector<15x15xf32>
    %281 = vector.shape_cast %278 : vector<15x15xf32> to vector<1x1x15x15xf32>
    tpu.vector_store %arg3[%c0_138, %c1_139, %c1_140, %c1_141], %281 {strides = array<i32>} : memref<1x3x30x30xf32, #tpu.memory_space<vmem>>, vector<1x1x15x15xf32>,
    %c42 = arith.constant 42 : index
    %282 = memref.load %arg1[%c42] : memref<82xf32, #tpu.memory_space<smem>>
    %283 = vector.broadcast %282 : f32 to vector<15x15xf32>
    %284 = arith.mulf %283, %39 : vector<15x15xf32>
    %c43 = arith.constant 43 : index
    %285 = memref.load %arg1[%c43] : memref<82xf32, #tpu.memory_space<smem>>
    %286 = vector.broadcast %285 : f32 to vector<15x15xf32>
    %287 = arith.mulf %286, %41 : vector<15x15xf32>
    %288 = arith.addf %284, %287 : vector<15x15xf32>
    %c44 = arith.constant 44 : index
    %289 = memref.load %arg1[%c44] : memref<82xf32, #tpu.memory_space<smem>>
    %290 = vector.broadcast %289 : f32 to vector<15x15xf32>
    %291 = arith.mulf %290, %43 : vector<15x15xf32>
    %292 = arith.addf %288, %291 : vector<15x15xf32>
    %c0_142 = arith.constant 0 : index
    %c2_143 = arith.constant 2 : index
    %c1_144 = arith.constant 1 : index
    %c1_145 = arith.constant 1 : index
    %293 = vector.load %arg3[%c0_142, %c2_143, %c1_144, %c1_145] : memref<1x3x30x30xf32, #tpu.memory_space<vmem>>, vector<1x1x15x15xf32>
    %294 = vector.shape_cast %293 : vector<1x1x15x15xf32> to vector<15x15xf32>
    %295 = arith.addf %294, %292 : vector<15x15xf32>
    %c0_146 = arith.constant 0 : index
    %c2_147 = arith.constant 2 : index
    %c1_148 = arith.constant 1 : index
    %c1_149 = arith.constant 1 : index
    %296 = vector.load %arg3[%c0_146, %c2_147, %c1_148, %c1_149] : memref<1x3x30x30xf32, #tpu.memory_space<vmem>>, vector<1x1x15x15xf32>
    %297 = vector.shape_cast %296 : vector<1x1x15x15xf32> to vector<15x15xf32>
    %298 = vector.shape_cast %295 : vector<15x15xf32> to vector<1x1x15x15xf32>
    tpu.vector_store %arg3[%c0_146, %c2_147, %c1_148, %c1_149], %298 {strides = array<i32>} : memref<1x3x30x30xf32, #tpu.memory_space<vmem>>, vector<1x1x15x15xf32>,
    %c45 = arith.constant 45 : index
    %299 = memref.load %arg1[%c45] : memref<82xf32, #tpu.memory_space<smem>>
    %300 = vector.broadcast %299 : f32 to vector<15x15xf32>
    %301 = arith.mulf %300, %39 : vector<15x15xf32>
    %c46 = arith.constant 46 : index
    %302 = memref.load %arg1[%c46] : memref<82xf32, #tpu.memory_space<smem>>
    %303 = vector.broadcast %302 : f32 to vector<15x15xf32>
    %304 = arith.mulf %303, %41 : vector<15x15xf32>
    %305 = arith.addf %301, %304 : vector<15x15xf32>
    %c47 = arith.constant 47 : index
    %306 = memref.load %arg1[%c47] : memref<82xf32, #tpu.memory_space<smem>>
    %307 = vector.broadcast %306 : f32 to vector<15x15xf32>
    %308 = arith.mulf %307, %43 : vector<15x15xf32>
    %309 = arith.addf %305, %308 : vector<15x15xf32>
    %c0_150 = arith.constant 0 : index
    %c0_151 = arith.constant 0 : index
    %c1_152 = arith.constant 1 : index
    %c2_153 = arith.constant 2 : index
    %310 = vector.load %arg3[%c0_150, %c0_151, %c1_152, %c2_153] : memref<1x3x30x30xf32, #tpu.memory_space<vmem>>, vector<1x1x15x15xf32>
    %311 = vector.shape_cast %310 : vector<1x1x15x15xf32> to vector<15x15xf32>
    %312 = arith.addf %311, %309 : vector<15x15xf32>
    %c0_154 = arith.constant 0 : index
    %c0_155 = arith.constant 0 : index
    %c1_156 = arith.constant 1 : index
    %c2_157 = arith.constant 2 : index
    %313 = vector.load %arg3[%c0_154, %c0_155, %c1_156, %c2_157] : memref<1x3x30x30xf32, #tpu.memory_space<vmem>>, vector<1x1x15x15xf32>
    %314 = vector.shape_cast %313 : vector<1x1x15x15xf32> to vector<15x15xf32>
    %315 = vector.shape_cast %312 : vector<15x15xf32> to vector<1x1x15x15xf32>
    tpu.vector_store %arg3[%c0_154, %c0_155, %c1_156, %c2_157], %315 {strides = array<i32>} : memref<1x3x30x30xf32, #tpu.memory_space<vmem>>, vector<1x1x15x15xf32>,
    %c48 = arith.constant 48 : index
    %316 = memref.load %arg1[%c48] : memref<82xf32, #tpu.memory_space<smem>>
    %317 = vector.broadcast %316 : f32 to vector<15x15xf32>
    %318 = arith.mulf %317, %39 : vector<15x15xf32>
    %c49 = arith.constant 49 : index
    %319 = memref.load %arg1[%c49] : memref<82xf32, #tpu.memory_space<smem>>
    %320 = vector.broadcast %319 : f32 to vector<15x15xf32>
    %321 = arith.mulf %320, %41 : vector<15x15xf32>
    %322 = arith.addf %318, %321 : vector<15x15xf32>
    %c50 = arith.constant 50 : index
    %323 = memref.load %arg1[%c50] : memref<82xf32, #tpu.memory_space<smem>>
    %324 = vector.broadcast %323 : f32 to vector<15x15xf32>
    %325 = arith.mulf %324, %43 : vector<15x15xf32>
    %326 = arith.addf %322, %325 : vector<15x15xf32>
    %c0_158 = arith.constant 0 : index
    %c1_159 = arith.constant 1 : index
    %c1_160 = arith.constant 1 : index
    %c2_161 = arith.constant 2 : index
    %327 = vector.load %arg3[%c0_158, %c1_159, %c1_160, %c2_161] : memref<1x3x30x30xf32, #tpu.memory_space<vmem>>, vector<1x1x15x15xf32>
    %328 = vector.shape_cast %327 : vector<1x1x15x15xf32> to vector<15x15xf32>
    %329 = arith.addf %328, %326 : vector<15x15xf32>
    %c0_162 = arith.constant 0 : index
    %c1_163 = arith.constant 1 : index
    %c1_164 = arith.constant 1 : index
    %c2_165 = arith.constant 2 : index
    %330 = vector.load %arg3[%c0_162, %c1_163, %c1_164, %c2_165] : memref<1x3x30x30xf32, #tpu.memory_space<vmem>>, vector<1x1x15x15xf32>
    %331 = vector.shape_cast %330 : vector<1x1x15x15xf32> to vector<15x15xf32>
    %332 = vector.shape_cast %329 : vector<15x15xf32> to vector<1x1x15x15xf32>
    tpu.vector_store %arg3[%c0_162, %c1_163, %c1_164, %c2_165], %332 {strides = array<i32>} : memref<1x3x30x30xf32, #tpu.memory_space<vmem>>, vector<1x1x15x15xf32>,
    %c51 = arith.constant 51 : index
    %333 = memref.load %arg1[%c51] : memref<82xf32, #tpu.memory_space<smem>>
    %334 = vector.broadcast %333 : f32 to vector<15x15xf32>
    %335 = arith.mulf %334, %39 : vector<15x15xf32>
    %c52 = arith.constant 52 : index
    %336 = memref.load %arg1[%c52] : memref<82xf32, #tpu.memory_space<smem>>
    %337 = vector.broadcast %336 : f32 to vector<15x15xf32>
    %338 = arith.mulf %337, %41 : vector<15x15xf32>
    %339 = arith.addf %335, %338 : vector<15x15xf32>
    %c53 = arith.constant 53 : index
    %340 = memref.load %arg1[%c53] : memref<82xf32, #tpu.memory_space<smem>>
    %341 = vector.broadcast %340 : f32 to vector<15x15xf32>
    %342 = arith.mulf %341, %43 : vector<15x15xf32>
    %343 = arith.addf %339, %342 : vector<15x15xf32>
    %c0_166 = arith.constant 0 : index
    %c2_167 = arith.constant 2 : index
    %c1_168 = arith.constant 1 : index
    %c2_169 = arith.constant 2 : index
    %344 = vector.load %arg3[%c0_166, %c2_167, %c1_168, %c2_169] : memref<1x3x30x30xf32, #tpu.memory_space<vmem>>, vector<1x1x15x15xf32>
    %345 = vector.shape_cast %344 : vector<1x1x15x15xf32> to vector<15x15xf32>
    %346 = arith.addf %345, %343 : vector<15x15xf32>
    %c0_170 = arith.constant 0 : index
    %c2_171 = arith.constant 2 : index
    %c1_172 = arith.constant 1 : index
    %c2_173 = arith.constant 2 : index
    %347 = vector.load %arg3[%c0_170, %c2_171, %c1_172, %c2_173] : memref<1x3x30x30xf32, #tpu.memory_space<vmem>>, vector<1x1x15x15xf32>
    %348 = vector.shape_cast %347 : vector<1x1x15x15xf32> to vector<15x15xf32>
    %349 = vector.shape_cast %346 : vector<15x15xf32> to vector<1x1x15x15xf32>
    tpu.vector_store %arg3[%c0_170, %c2_171, %c1_172, %c2_173], %349 {strides = array<i32>} : memref<1x3x30x30xf32, #tpu.memory_space<vmem>>, vector<1x1x15x15xf32>,
    %c54 = arith.constant 54 : index
    %350 = memref.load %arg1[%c54] : memref<82xf32, #tpu.memory_space<smem>>
    %351 = vector.broadcast %350 : f32 to vector<15x15xf32>
    %352 = arith.mulf %351, %39 : vector<15x15xf32>
    %c55 = arith.constant 55 : index
    %353 = memref.load %arg1[%c55] : memref<82xf32, #tpu.memory_space<smem>>
    %354 = vector.broadcast %353 : f32 to vector<15x15xf32>
    %355 = arith.mulf %354, %41 : vector<15x15xf32>
    %356 = arith.addf %352, %355 : vector<15x15xf32>
    %c56 = arith.constant 56 : index
    %357 = memref.load %arg1[%c56] : memref<82xf32, #tpu.memory_space<smem>>
    %358 = vector.broadcast %357 : f32 to vector<15x15xf32>
    %359 = arith.mulf %358, %43 : vector<15x15xf32>
    %360 = arith.addf %356, %359 : vector<15x15xf32>
    %c0_174 = arith.constant 0 : index
    %c0_175 = arith.constant 0 : index
    %c2_176 = arith.constant 2 : index
    %c0_177 = arith.constant 0 : index
    %361 = vector.load %arg3[%c0_174, %c0_175, %c2_176, %c0_177] : memref<1x3x30x30xf32, #tpu.memory_space<vmem>>, vector<1x1x15x15xf32>
    %362 = vector.shape_cast %361 : vector<1x1x15x15xf32> to vector<15x15xf32>
    %363 = arith.addf %362, %360 : vector<15x15xf32>
    %c0_178 = arith.constant 0 : index
    %c0_179 = arith.constant 0 : index
    %c2_180 = arith.constant 2 : index
    %c0_181 = arith.constant 0 : index
    %364 = vector.load %arg3[%c0_178, %c0_179, %c2_180, %c0_181] : memref<1x3x30x30xf32, #tpu.memory_space<vmem>>, vector<1x1x15x15xf32>
    %365 = vector.shape_cast %364 : vector<1x1x15x15xf32> to vector<15x15xf32>
    %366 = vector.shape_cast %363 : vector<15x15xf32> to vector<1x1x15x15xf32>
    tpu.vector_store %arg3[%c0_178, %c0_179, %c2_180, %c0_181], %366 {strides = array<i32>} : memref<1x3x30x30xf32, #tpu.memory_space<vmem>>, vector<1x1x15x15xf32>,
    %c57 = arith.constant 57 : index
    %367 = memref.load %arg1[%c57] : memref<82xf32, #tpu.memory_space<smem>>
    %368 = vector.broadcast %367 : f32 to vector<15x15xf32>
    %369 = arith.mulf %368, %39 : vector<15x15xf32>
    %c58 = arith.constant 58 : index
    %370 = memref.load %arg1[%c58] : memref<82xf32, #tpu.memory_space<smem>>
    %371 = vector.broadcast %370 : f32 to vector<15x15xf32>
    %372 = arith.mulf %371, %41 : vector<15x15xf32>
    %373 = arith.addf %369, %372 : vector<15x15xf32>
    %c59 = arith.constant 59 : index
    %374 = memref.load %arg1[%c59] : memref<82xf32, #tpu.memory_space<smem>>
    %375 = vector.broadcast %374 : f32 to vector<15x15xf32>
    %376 = arith.mulf %375, %43 : vector<15x15xf32>
    %377 = arith.addf %373, %376 : vector<15x15xf32>
    %c0_182 = arith.constant 0 : index
    %c1_183 = arith.constant 1 : index
    %c2_184 = arith.constant 2 : index
    %c0_185 = arith.constant 0 : index
    %378 = vector.load %arg3[%c0_182, %c1_183, %c2_184, %c0_185] : memref<1x3x30x30xf32, #tpu.memory_space<vmem>>, vector<1x1x15x15xf32>
    %379 = vector.shape_cast %378 : vector<1x1x15x15xf32> to vector<15x15xf32>
    %380 = arith.addf %379, %377 : vector<15x15xf32>
    %c0_186 = arith.constant 0 : index
    %c1_187 = arith.constant 1 : index
    %c2_188 = arith.constant 2 : index
    %c0_189 = arith.constant 0 : index
    %381 = vector.load %arg3[%c0_186, %c1_187, %c2_188, %c0_189] : memref<1x3x30x30xf32, #tpu.memory_space<vmem>>, vector<1x1x15x15xf32>
    %382 = vector.shape_cast %381 : vector<1x1x15x15xf32> to vector<15x15xf32>
    %383 = vector.shape_cast %380 : vector<15x15xf32> to vector<1x1x15x15xf32>
    tpu.vector_store %arg3[%c0_186, %c1_187, %c2_188, %c0_189], %383 {strides = array<i32>} : memref<1x3x30x30xf32, #tpu.memory_space<vmem>>, vector<1x1x15x15xf32>,
    %c60 = arith.constant 60 : index
    %384 = memref.load %arg1[%c60] : memref<82xf32, #tpu.memory_space<smem>>
    %385 = vector.broadcast %384 : f32 to vector<15x15xf32>
    %386 = arith.mulf %385, %39 : vector<15x15xf32>
    %c61 = arith.constant 61 : index
    %387 = memref.load %arg1[%c61] : memref<82xf32, #tpu.memory_space<smem>>
    %388 = vector.broadcast %387 : f32 to vector<15x15xf32>
    %389 = arith.mulf %388, %41 : vector<15x15xf32>
    %390 = arith.addf %386, %389 : vector<15x15xf32>
    %c62 = arith.constant 62 : index
    %391 = memref.load %arg1[%c62] : memref<82xf32, #tpu.memory_space<smem>>
    %392 = vector.broadcast %391 : f32 to vector<15x15xf32>
    %393 = arith.mulf %392, %43 : vector<15x15xf32>
    %394 = arith.addf %390, %393 : vector<15x15xf32>
    %c0_190 = arith.constant 0 : index
    %c2_191 = arith.constant 2 : index
    %c2_192 = arith.constant 2 : index
    %c0_193 = arith.constant 0 : index
    %395 = vector.load %arg3[%c0_190, %c2_191, %c2_192, %c0_193] : memref<1x3x30x30xf32, #tpu.memory_space<vmem>>, vector<1x1x15x15xf32>
    %396 = vector.shape_cast %395 : vector<1x1x15x15xf32> to vector<15x15xf32>
    %397 = arith.addf %396, %394 : vector<15x15xf32>
    %c0_194 = arith.constant 0 : index
    %c2_195 = arith.constant 2 : index
    %c2_196 = arith.constant 2 : index
    %c0_197 = arith.constant 0 : index
    %398 = vector.load %arg3[%c0_194, %c2_195, %c2_196, %c0_197] : memref<1x3x30x30xf32, #tpu.memory_space<vmem>>, vector<1x1x15x15xf32>
    %399 = vector.shape_cast %398 : vector<1x1x15x15xf32> to vector<15x15xf32>
    %400 = vector.shape_cast %397 : vector<15x15xf32> to vector<1x1x15x15xf32>
    tpu.vector_store %arg3[%c0_194, %c2_195, %c2_196, %c0_197], %400 {strides = array<i32>} : memref<1x3x30x30xf32, #tpu.memory_space<vmem>>, vector<1x1x15x15xf32>,
    %c63 = arith.constant 63 : index
    %401 = memref.load %arg1[%c63] : memref<82xf32, #tpu.memory_space<smem>>
    %402 = vector.broadcast %401 : f32 to vector<15x15xf32>
    %403 = arith.mulf %402, %39 : vector<15x15xf32>
    %c64 = arith.constant 64 : index
    %404 = memref.load %arg1[%c64] : memref<82xf32, #tpu.memory_space<smem>>
    %405 = vector.broadcast %404 : f32 to vector<15x15xf32>
    %406 = arith.mulf %405, %41 : vector<15x15xf32>
    %407 = arith.addf %403, %406 : vector<15x15xf32>
    %c65 = arith.constant 65 : index
    %408 = memref.load %arg1[%c65] : memref<82xf32, #tpu.memory_space<smem>>
    %409 = vector.broadcast %408 : f32 to vector<15x15xf32>
    %410 = arith.mulf %409, %43 : vector<15x15xf32>
    %411 = arith.addf %407, %410 : vector<15x15xf32>
    %c0_198 = arith.constant 0 : index
    %c0_199 = arith.constant 0 : index
    %c2_200 = arith.constant 2 : index
    %c1_201 = arith.constant 1 : index
    %412 = vector.load %arg3[%c0_198, %c0_199, %c2_200, %c1_201] : memref<1x3x30x30xf32, #tpu.memory_space<vmem>>, vector<1x1x15x15xf32>
    %413 = vector.shape_cast %412 : vector<1x1x15x15xf32> to vector<15x15xf32>
    %414 = arith.addf %413, %411 : vector<15x15xf32>
    %c0_202 = arith.constant 0 : index
    %c0_203 = arith.constant 0 : index
    %c2_204 = arith.constant 2 : index
    %c1_205 = arith.constant 1 : index
    %415 = vector.load %arg3[%c0_202, %c0_203, %c2_204, %c1_205] : memref<1x3x30x30xf32, #tpu.memory_space<vmem>>, vector<1x1x15x15xf32>
    %416 = vector.shape_cast %415 : vector<1x1x15x15xf32> to vector<15x15xf32>
    %417 = vector.shape_cast %414 : vector<15x15xf32> to vector<1x1x15x15xf32>
    tpu.vector_store %arg3[%c0_202, %c0_203, %c2_204, %c1_205], %417 {strides = array<i32>} : memref<1x3x30x30xf32, #tpu.memory_space<vmem>>, vector<1x1x15x15xf32>,
    %c66 = arith.constant 66 : index
    %418 = memref.load %arg1[%c66] : memref<82xf32, #tpu.memory_space<smem>>
    %419 = vector.broadcast %418 : f32 to vector<15x15xf32>
    %420 = arith.mulf %419, %39 : vector<15x15xf32>
    %c67 = arith.constant 67 : index
    %421 = memref.load %arg1[%c67] : memref<82xf32, #tpu.memory_space<smem>>
    %422 = vector.broadcast %421 : f32 to vector<15x15xf32>
    %423 = arith.mulf %422, %41 : vector<15x15xf32>
    %424 = arith.addf %420, %423 : vector<15x15xf32>
    %c68 = arith.constant 68 : index
    %425 = memref.load %arg1[%c68] : memref<82xf32, #tpu.memory_space<smem>>
    %426 = vector.broadcast %425 : f32 to vector<15x15xf32>
    %427 = arith.mulf %426, %43 : vector<15x15xf32>
    %428 = arith.addf %424, %427 : vector<15x15xf32>
    %c0_206 = arith.constant 0 : index
    %c1_207 = arith.constant 1 : index
    %c2_208 = arith.constant 2 : index
    %c1_209 = arith.constant 1 : index
    %429 = vector.load %arg3[%c0_206, %c1_207, %c2_208, %c1_209] : memref<1x3x30x30xf32, #tpu.memory_space<vmem>>, vector<1x1x15x15xf32>
    %430 = vector.shape_cast %429 : vector<1x1x15x15xf32> to vector<15x15xf32>
    %431 = arith.addf %430, %428 : vector<15x15xf32>
    %c0_210 = arith.constant 0 : index
    %c1_211 = arith.constant 1 : index
    %c2_212 = arith.constant 2 : index
    %c1_213 = arith.constant 1 : index
    %432 = vector.load %arg3[%c0_210, %c1_211, %c2_212, %c1_213] : memref<1x3x30x30xf32, #tpu.memory_space<vmem>>, vector<1x1x15x15xf32>
    %433 = vector.shape_cast %432 : vector<1x1x15x15xf32> to vector<15x15xf32>
    %434 = vector.shape_cast %431 : vector<15x15xf32> to vector<1x1x15x15xf32>
    tpu.vector_store %arg3[%c0_210, %c1_211, %c2_212, %c1_213], %434 {strides = array<i32>} : memref<1x3x30x30xf32, #tpu.memory_space<vmem>>, vector<1x1x15x15xf32>,
    %c69 = arith.constant 69 : index
    %435 = memref.load %arg1[%c69] : memref<82xf32, #tpu.memory_space<smem>>
    %436 = vector.broadcast %435 : f32 to vector<15x15xf32>
    %437 = arith.mulf %436, %39 : vector<15x15xf32>
    %c70 = arith.constant 70 : index
    %438 = memref.load %arg1[%c70] : memref<82xf32, #tpu.memory_space<smem>>
    %439 = vector.broadcast %438 : f32 to vector<15x15xf32>
    %440 = arith.mulf %439, %41 : vector<15x15xf32>
    %441 = arith.addf %437, %440 : vector<15x15xf32>
    %c71 = arith.constant 71 : index
    %442 = memref.load %arg1[%c71] : memref<82xf32, #tpu.memory_space<smem>>
    %443 = vector.broadcast %442 : f32 to vector<15x15xf32>
    %444 = arith.mulf %443, %43 : vector<15x15xf32>
    %445 = arith.addf %441, %444 : vector<15x15xf32>
    %c0_214 = arith.constant 0 : index
    %c2_215 = arith.constant 2 : index
    %c2_216 = arith.constant 2 : index
    %c1_217 = arith.constant 1 : index
    %446 = vector.load %arg3[%c0_214, %c2_215, %c2_216, %c1_217] : memref<1x3x30x30xf32, #tpu.memory_space<vmem>>, vector<1x1x15x15xf32>
    %447 = vector.shape_cast %446 : vector<1x1x15x15xf32> to vector<15x15xf32>
    %448 = arith.addf %447, %445 : vector<15x15xf32>
    %c0_218 = arith.constant 0 : index
    %c2_219 = arith.constant 2 : index
    %c2_220 = arith.constant 2 : index
    %c1_221 = arith.constant 1 : index
    %449 = vector.load %arg3[%c0_218, %c2_219, %c2_220, %c1_221] : memref<1x3x30x30xf32, #tpu.memory_space<vmem>>, vector<1x1x15x15xf32>
    %450 = vector.shape_cast %449 : vector<1x1x15x15xf32> to vector<15x15xf32>
    %451 = vector.shape_cast %448 : vector<15x15xf32> to vector<1x1x15x15xf32>
    tpu.vector_store %arg3[%c0_218, %c2_219, %c2_220, %c1_221], %451 {strides = array<i32>} : memref<1x3x30x30xf32, #tpu.memory_space<vmem>>, vector<1x1x15x15xf32>,
    %c72 = arith.constant 72 : index
    %452 = memref.load %arg1[%c72] : memref<82xf32, #tpu.memory_space<smem>>
    %453 = vector.broadcast %452 : f32 to vector<15x15xf32>
    %454 = arith.mulf %453, %39 : vector<15x15xf32>
    %c73 = arith.constant 73 : index
    %455 = memref.load %arg1[%c73] : memref<82xf32, #tpu.memory_space<smem>>
    %456 = vector.broadcast %455 : f32 to vector<15x15xf32>
    %457 = arith.mulf %456, %41 : vector<15x15xf32>
    %458 = arith.addf %454, %457 : vector<15x15xf32>
    %c74 = arith.constant 74 : index
    %459 = memref.load %arg1[%c74] : memref<82xf32, #tpu.memory_space<smem>>
    %460 = vector.broadcast %459 : f32 to vector<15x15xf32>
    %461 = arith.mulf %460, %43 : vector<15x15xf32>
    %462 = arith.addf %458, %461 : vector<15x15xf32>
    %c0_222 = arith.constant 0 : index
    %c0_223 = arith.constant 0 : index
    %c2_224 = arith.constant 2 : index
    %c2_225 = arith.constant 2 : index
    %463 = vector.load %arg3[%c0_222, %c0_223, %c2_224, %c2_225] : memref<1x3x30x30xf32, #tpu.memory_space<vmem>>, vector<1x1x15x15xf32>
    %464 = vector.shape_cast %463 : vector<1x1x15x15xf32> to vector<15x15xf32>
    %465 = arith.addf %464, %462 : vector<15x15xf32>
    %c0_226 = arith.constant 0 : index
    %c0_227 = arith.constant 0 : index
    %c2_228 = arith.constant 2 : index
    %c2_229 = arith.constant 2 : index
    %466 = vector.load %arg3[%c0_226, %c0_227, %c2_228, %c2_229] : memref<1x3x30x30xf32, #tpu.memory_space<vmem>>, vector<1x1x15x15xf32>
    %467 = vector.shape_cast %466 : vector<1x1x15x15xf32> to vector<15x15xf32>
    %468 = vector.shape_cast %465 : vector<15x15xf32> to vector<1x1x15x15xf32>
    tpu.vector_store %arg3[%c0_226, %c0_227, %c2_228, %c2_229], %468 {strides = array<i32>} : memref<1x3x30x30xf32, #tpu.memory_space<vmem>>, vector<1x1x15x15xf32>,
    %c75 = arith.constant 75 : index
    %469 = memref.load %arg1[%c75] : memref<82xf32, #tpu.memory_space<smem>>
    %470 = vector.broadcast %469 : f32 to vector<15x15xf32>
    %471 = arith.mulf %470, %39 : vector<15x15xf32>
    %c76 = arith.constant 76 : index
    %472 = memref.load %arg1[%c76] : memref<82xf32, #tpu.memory_space<smem>>
    %473 = vector.broadcast %472 : f32 to vector<15x15xf32>
    %474 = arith.mulf %473, %41 : vector<15x15xf32>
    %475 = arith.addf %471, %474 : vector<15x15xf32>
    %c77 = arith.constant 77 : index
    %476 = memref.load %arg1[%c77] : memref<82xf32, #tpu.memory_space<smem>>
    %477 = vector.broadcast %476 : f32 to vector<15x15xf32>
    %478 = arith.mulf %477, %43 : vector<15x15xf32>
    %479 = arith.addf %475, %478 : vector<15x15xf32>
    %c0_230 = arith.constant 0 : index
    %c1_231 = arith.constant 1 : index
    %c2_232 = arith.constant 2 : index
    %c2_233 = arith.constant 2 : index
    %480 = vector.load %arg3[%c0_230, %c1_231, %c2_232, %c2_233] : memref<1x3x30x30xf32, #tpu.memory_space<vmem>>, vector<1x1x15x15xf32>
    %481 = vector.shape_cast %480 : vector<1x1x15x15xf32> to vector<15x15xf32>
    %482 = arith.addf %481, %479 : vector<15x15xf32>
    %c0_234 = arith.constant 0 : index
    %c1_235 = arith.constant 1 : index
    %c2_236 = arith.constant 2 : index
    %c2_237 = arith.constant 2 : index
    %483 = vector.load %arg3[%c0_234, %c1_235, %c2_236, %c2_237] : memref<1x3x30x30xf32, #tpu.memory_space<vmem>>, vector<1x1x15x15xf32>
    %484 = vector.shape_cast %483 : vector<1x1x15x15xf32> to vector<15x15xf32>
    %485 = vector.shape_cast %482 : vector<15x15xf32> to vector<1x1x15x15xf32>
    tpu.vector_store %arg3[%c0_234, %c1_235, %c2_236, %c2_237], %485 {strides = array<i32>} : memref<1x3x30x30xf32, #tpu.memory_space<vmem>>, vector<1x1x15x15xf32>,
    %c78 = arith.constant 78 : index
    %486 = memref.load %arg1[%c78] : memref<82xf32, #tpu.memory_space<smem>>
    %487 = vector.broadcast %486 : f32 to vector<15x15xf32>
    %488 = arith.mulf %487, %39 : vector<15x15xf32>
    %c79 = arith.constant 79 : index
    %489 = memref.load %arg1[%c79] : memref<82xf32, #tpu.memory_space<smem>>
    %490 = vector.broadcast %489 : f32 to vector<15x15xf32>
    %491 = arith.mulf %490, %41 : vector<15x15xf32>
    %492 = arith.addf %488, %491 : vector<15x15xf32>
    %c80 = arith.constant 80 : index
    %493 = memref.load %arg1[%c80] : memref<82xf32, #tpu.memory_space<smem>>
    %494 = vector.broadcast %493 : f32 to vector<15x15xf32>
    %495 = arith.mulf %494, %43 : vector<15x15xf32>
    %496 = arith.addf %492, %495 : vector<15x15xf32>
    %c0_238 = arith.constant 0 : index
    %c2_239 = arith.constant 2 : index
    %c2_240 = arith.constant 2 : index
    %c2_241 = arith.constant 2 : index
    %497 = vector.load %arg3[%c0_238, %c2_239, %c2_240, %c2_241] : memref<1x3x30x30xf32, #tpu.memory_space<vmem>>, vector<1x1x15x15xf32>
    %498 = vector.shape_cast %497 : vector<1x1x15x15xf32> to vector<15x15xf32>
    %499 = arith.addf %498, %496 : vector<15x15xf32>
    %c0_242 = arith.constant 0 : index
    %c2_243 = arith.constant 2 : index
    %c2_244 = arith.constant 2 : index
    %c2_245 = arith.constant 2 : index
    %500 = vector.load %arg3[%c0_242, %c2_243, %c2_244, %c2_245] : memref<1x3x30x30xf32, #tpu.memory_space<vmem>>, vector<1x1x15x15xf32>
    %501 = vector.shape_cast %500 : vector<1x1x15x15xf32> to vector<15x15xf32>
    %502 = vector.shape_cast %499 : vector<15x15xf32> to vector<1x1x15x15xf32>
    tpu.vector_store %arg3[%c0_242, %c2_243, %c2_244, %c2_245], %502 {strides = array<i32>} : memref<1x3x30x30xf32, #tpu.memory_space<vmem>>, vector<1x1x15x15xf32>,
    return
  }
  func.func @transform_0(%arg0: i32) -> i32 {
    %c0_i32 = arith.constant 0 : i32
    %c0_i32_0 = arith.constant 0 : i32
    return %c0_i32 : i32
  }
  func.func @transform_1(%arg0: i32) -> (i32, i32, i32, i32) {
    %c0_i32 = arith.constant 0 : i32
    %c0_i32_0 = arith.constant 0 : i32
    %c0_i32_1 = arith.constant 0 : i32
    %c0_i32_2 = arith.constant 0 : i32
    return %arg0, %c0_i32, %c0_i32_0, %c0_i32_1 : i32, i32, i32, i32
  }
  func.func @transform_2(%arg0: i32) -> (i32, i32, i32, i32) {
    %c0_i32 = arith.constant 0 : i32
    %c0_i32_0 = arith.constant 0 : i32
    %c0_i32_1 = arith.constant 0 : i32
    %c0_i32_2 = arith.constant 0 : i32
    return %arg0, %c0_i32, %c0_i32_0, %c0_i32_1 : i32, i32, i32, i32
  }
}

</mosaic_0001>

<llo_original>
// kernel: conv_transpose2d_forward.1
$region0: #{conv_transpose2d_forward.1}
  #allocation0 [shape = 'u32[]', space=smem, size = 0x4, offset = 0x4, fixed_abs, tag = 'smem constant byte address 0x4 - core index']
  #allocation1 [shape = 'u32[72,128]{1,0:T(1,128)}', space=vmem, size = 0x9000, scoped, tag = 'internal scratch']
  %s0 = inlined_call_operand.vmem [shape: f32[82], index: 0, kind: input, shape index: {}]
  %s1 = inlined_call_operand.vmem [shape: f32[2,4,16,16], index: 1, kind: input, shape index: {}]
  %s2 = inlined_call_operand.vmem [shape: f32[2,3,30,30], index: 2, kind: output, shape index: {}]
  %s3 = sld [smem:[#allocation0]]
  $region45: #{conv_transpose2d_forward.1} parent=0
    _
  %s5 = ssub.s32 1, %s3
  %s6 = scalar_select 0, %s5, %s3
  $region1: #{conv_transpose2d_forward.1} parent=0
    #allocation2 [shape = 'u8[512]{0}', space=smem, size = 0x200, scoped, tag = 'input window, operand 0, single buffered']
    #allocation3 [shape = 's32[2]{0}', space=sflag, size = 0x8, scoped, tag = 'scoped memory for conv_transpose2d_forward.1']
    %7 = vsyncpa [#allocation3], 0
    loop: start=0, step=1, limit=4
    $region2: #{conv_transpose2d_forward.1} parent=1 // loop_pre_header
      _
    $region3: #{conv_transpose2d_forward.1} parent=1 // loop_header
      %s9 = sphi 0, %s13
      %p10 = scmp.ge.s32.totalorder %s9, 4
      %s17 = sphi 0, %s17
      %s19 = sphi 0, %s17
      %s20 = sphi 0, %s19
      %s34 = sphi 0, %s20
      %s40 = sphi 0, %s42
      %s43 = sphi 0, %s40
      %s44 = sphi 0, %s43
      %s60 = sphi 0, %s44
      %s66 = sphi 0, %s68
      %s69 = sphi 0, %s66
      %s70 = sphi 0, %s69
      %s86 = sphi 0, %s70
    $region4: #{conv_transpose2d_forward.1} parent=1 // loop_header_branch
      %12 = sbr.rel (%p10) target = $region8
    $region5: #{conv_transpose2d_forward.1} parent=1 // loop_body
      %s14 = ssub.s32 %s9, 1
      %s15 = ssub.s32 %s9, 2
      %s16 = sadd.s32 %s9, 1
      %s18 = sadd.s32 %s17, 1
      %p21 = scmp.eq.s32.totalorder %s9, 1
      %p22 = scmp.ne.s32.totalorder %s17, %s19
      %p23 = scmp.eq.s32.totalorder %s9, 0
      %p24 = por %p22, %p23
      %p25 = scmp.ne.s32.totalorder %s17, %s19
      %p26 = scmp.eq.s32.totalorder %s14, 1
      %p27 = por %p25, %p26
      %p28 = scmp.ne.s32.totalorder %s19, %s20
      %p29 = scmp.eq.s32.totalorder %s14, 0
      %p30 = por %p28, %p29
      %p31 = scmp.ne.s32.totalorder %s19, %s20
      %p32 = scmp.eq.s32.totalorder %s15, 1
      %p33 = por %p31, %p32
      %p35 = scmp.ne.s32.totalorder %s20, %s34
      %p36 = scmp.eq.s32.totalorder %s15, 0
      %p37 = por %p35, %p36
      %s38 = ssub.s32 %s9, %s16
      %p39 = scmp.eq.s32.totalorder %s38, 0
      %s41 = sadd.s32 %s40, 1
      %s42 = scalar_select %p39, %s40, %s41
      %p45 = pneg %p39
      %p46 = scmp.eq.s32.totalorder %s9, 1
      %p47 = por %p45, %p46
      %p48 = scmp.ne.s32.totalorder %s40, %s43
      %p49 = scmp.eq.s32.totalorder %s9, 0
      %p50 = por %p48, %p49
      %p51 = scmp.ne.s32.totalorder %s40, %s43
      %p52 = scmp.eq.s32.totalorder %s14, 1
      %p53 = por %p51, %p52
      %p54 = scmp.ne.s32.totalorder %s43, %s44
      %p55 = scmp.eq.s32.totalorder %s14, 0
      %p56 = por %p54, %p55
      %p57 = scmp.ne.s32.totalorder %s43, %s44
      %p58 = scmp.eq.s32.totalorder %s15, 1
      %p59 = por %p57, %p58
      %p61 = scmp.ne.s32.totalorder %s44, %s60
      %p62 = scmp.eq.s32.totalorder %s15, 0
      %p63 = por %p61, %p62
      %s64 = ssub.s32 %s9, %s16
      %p65 = scmp.eq.s32.totalorder %s64, 0
      %s67 = sadd.s32 %s66, 1
      %s68 = scalar_select %p65, %s66, %s67
      %p71 = pneg %p65
      %p72 = scmp.eq.s32.totalorder %s9, 1
      %p73 = por %p71, %p72
      %p74 = scmp.ne.s32.totalorder %s66, %s69
      %p75 = scmp.eq.s32.totalorder %s9, 0
      %p76 = por %p74, %p75
      %p77 = scmp.ne.s32.totalorder %s66, %s69
      %p78 = scmp.eq.s32.totalorder %s14, 1
      %p79 = por %p77, %p78
      %p80 = scmp.ne.s32.totalorder %s69, %s70
      %p81 = scmp.eq.s32.totalorder %s14, 0
      %p82 = por %p80, %p81
      %p83 = scmp.ne.s32.totalorder %s69, %s70
      %p84 = scmp.eq.s32.totalorder %s15, 1
      %p85 = por %p83, %p84
      %p87 = scmp.ne.s32.totalorder %s70, %s86
      %p88 = scmp.eq.s32.totalorder %s15, 0
      %p89 = por %p87, %p88
      %p90 = scmp.le.s32.totalorder 1, %s9
      %p91 = scmp.lt.s32.totalorder %s9, 3
      %p92 = pnand %p90, %p91
      %p93 = pneg %p92
      // Predicated region
      $region9: #{conv_transpose2d_forward.1} parent=5 // pred_check
        _
      $region10: #{conv_transpose2d_forward.1} parent=5 // pred_check_branch
        %95 = sbr.rel (%p92) target = $region12
      $region11: #{conv_transpose2d_forward.1} parent=5 // pred_region
        %s96 = ssub.s32 %s9, 1
        // Predicated region
        $region13: #{conv_transpose2d_forward.1} parent=11 // pred_check
          %p97 = pneg %p30
        $region14: #{conv_transpose2d_forward.1} parent=11 // pred_check_branch
          %99 = sbr.rel (%p97) target = $region16
        $region15: #{conv_transpose2d_forward.1} parent=11 // pred_region
          %101 = vsyncadd [#allocation3], 0
          %s103 = sshll.u32 %s0, 4
          %s104 = int_to_ptr.vmem [resolvable:$true] %s103
          %106 = dma.vmem_to_smem %s104, 16, [#allocation2], [#allocation3]
        $region16: #{conv_transpose2d_forward.1} parent=11 // pred_fallthru
          _
      $region12: #{conv_transpose2d_forward.1} parent=5 // pred_fallthru
        _
      %p107 = scmp.lt.s32.totalorder %s9, 2
      // Predicated region
      $region17: #{conv_transpose2d_forward.1} parent=5 // pred_check
        %p108 = pneg %p107
      $region18: #{conv_transpose2d_forward.1} parent=5 // pred_check_branch
        %110 = sbr.rel (%p108) target = $region20
      $region19: #{conv_transpose2d_forward.1} parent=5 // pred_region
        // Predicated region
        $region21: #{conv_transpose2d_forward.1} parent=19 // pred_check
          %p111 = pneg %p50
        $region22: #{conv_transpose2d_forward.1} parent=19 // pred_check_branch
          %113 = sbr.rel (%p111) target = $region24
        $region23: #{conv_transpose2d_forward.1} parent=19 // pred_region
          %p114 = scmp.lt.s32.totalorder %s9, 1
          %s115 = scalar_select %p114, %s9, 1
          %s116 = smul.addr %s115, 8
          %s117 = smul.addr %s116, 8
          %s118 = scalar_lea.vmem %s1, %s117
        $region24: #{conv_transpose2d_forward.1} parent=19 // pred_fallthru
          _
      $region20: #{conv_transpose2d_forward.1} parent=5 // pred_fallthru
        _
      %p119 = scmp.le.s32.totalorder 1, %s9
      %p120 = scmp.lt.s32.totalorder %s9, 3
      %p121 = pnand %p119, %p120
      %p122 = pneg %p121
      // Predicated region
      $region25: #{conv_transpose2d_forward.1} parent=5 // pred_check
        _
      $region26: #{conv_transpose2d_forward.1} parent=5 // pred_check_branch
        %124 = sbr.rel (%p121) target = $region28
      $region27: #{conv_transpose2d_forward.1} parent=5 // pred_region
        %s125 = ssub.s32 %s9, 1
        // Predicated region
        $region29: #{conv_transpose2d_forward.1} parent=27 // pred_check
          %p126 = pneg %p30
        $region30: #{conv_transpose2d_forward.1} parent=27 // pred_check_branch
          %128 = sbr.rel (%p126) target = $region32
        $region31: #{conv_transpose2d_forward.1} parent=27 // pred_region
          %130 = dma.done [#allocation3], 16
        $region32: #{conv_transpose2d_forward.1} parent=27 // pred_fallthru
          _
        %131 = sfence
        %p132 = pneg %p30
        %p133 = pneg %p27
        %p134 = scmp.lt.s32.totalorder %s14, 1
        %s135 = scalar_select %p134, %s14, 1
        %s136 = smul.addr %s135, 8
        %s137 = smul.addr %s136, 8
        %s138 = scalar_lea.vmem %s1, %s137
        %p139 = pneg %p56
        %p140 = pneg %p53
        %p141 = pneg %p82
        %p142 = pneg %p79
        %p143 = scmp.lt.s32.totalorder %s14, 1
        %s144 = scalar_select %p143, %s14, 1
        %s145 = smul.addr %s144, 12
        %s146 = smul.addr %s145, 8
        %s147 = scalar_lea.vmem %s2, %s146
        %p148 = scmp.lt.s32.totalorder %s14, 1
        %s149 = scalar_select %p148, %s14, 1
        %s150 = smul.addr %s149, 8
        %s151 = smul.addr %s150, 8
        %s152 = scalar_lea.vmem %s1, %s151
        %p153 = scmp.lt.s32.totalorder %s14, 1
        %s154 = scalar_select %p153, %s14, 1
        %s155 = smul.addr %s154, 12
        %s156 = smul.addr %s155, 8
        %s157 = scalar_lea.vmem %s2, %s156
        %s158 = sld [smem:[#allocation2 + $0x51]]
        %v159 = vlaneseq
        %v160 = vshrl.u32 %v159, 7
        %v161 = vadd.s32 %v160, 8
        %v162 = vadd.s32 %v160, 16
        %v163 = vadd.s32 %v160, 24
        %v164 = vlaneseq
        %v165 = vand.u32 %v164, 127
        %vm166 = vcmp.lt.s32.totalorder %v160, 14
        %v167 = vsel %vm166, %v160, 14
        %vm168 = vcmp.lt.s32.totalorder %v161, 14
        %v169 = vsel %vm168, %v161, 14
        %vm170 = vcmp.lt.s32.totalorder %v162, 14
        %v171 = vsel %vm170, %v162, 14
        %vm172 = vcmp.lt.s32.totalorder %v163, 14
        %v173 = vsel %vm172, %v163, 14
        %v174 = vsub.s32 %v160, 2
        %v175 = vsub.s32 %v161, 2
        %v176 = vsub.s32 %v162, 2
        %v177 = vsub.s32 %v163, 2
        %vm178 = vcmp.gt.s32.totalorder %v174, 0
        %v179 = vsel %vm178, %v174, 0
        %vm180 = vcmp.gt.s32.totalorder %v175, 0
        %v181 = vsel %vm180, %v175, 0
        %vm182 = vcmp.gt.s32.totalorder %v176, 0
        %v183 = vsel %vm182, %v176, 0
        %vm184 = vcmp.gt.s32.totalorder %v177, 0
        %v185 = vsel %vm184, %v177, 0
        %v186 = vsub.s32 %v167, %v179
        %v187 = vsub.s32 %v169, %v181
        %v188 = vsub.s32 %v171, %v183
        %v189 = vsub.s32 %v173, %v185
        %v190 = vadd.s32 %v186, 1
        %v191 = vadd.s32 %v187, 1
        %v192 = vadd.s32 %v188, 1
        %v193 = vadd.s32 %v189, 1
        %vm194 = vcmp.gt.s32.totalorder %v190, 0
        %v195 = vsel %vm194, %v190, 0
        %vm196 = vcmp.gt.s32.totalorder %v191, 0
        %v197 = vsel %vm196, %v191, 0
        %vm198 = vcmp.gt.s32.totalorder %v192, 0
        %v199 = vsel %vm198, %v192, 0
        %vm200 = vcmp.gt.s32.totalorder %v193, 0
        %v201 = vsel %vm200, %v193, 0
        %vm202 = vcmp.lt.s32.totalorder %v165, 14
        %v203 = vsel %vm202, %v165, 14
        %v204 = vsub.s32 %v165, 2
        %vm205 = vcmp.gt.s32.totalorder %v204, 0
        %v206 = vsel %vm205, %v204, 0
        %v207 = vsub.s32 %v203, %v206
        %v208 = vadd.s32 %v207, 1
        %vm209 = vcmp.gt.s32.totalorder %v208, 0
        %v210 = vsel %vm209, %v208, 0
        %v211 = vmul.u32 %v195, %v210
        %v212 = vmul.u32 %v197, %v210
        %v213 = vmul.u32 %v199, %v210
        %v214 = vmul.u32 %v201, %v210
        %v215 = vcvt.s32.f32 %v211
        %v216 = vcvt.s32.f32 %v212
        %v217 = vcvt.s32.f32 %v213
        %v218 = vcvt.s32.f32 %v214
        %v219 = vstv %s158
        %v220 = vmul.f32 %v219, %v215
        %v221 = vmul.f32 %v219, %v216
        %v222 = vmul.f32 %v219, %v217
        %v223 = vmul.f32 %v219, %v218
        %vm224 = vcmask 244736
        %225 = vst.msk [vmem:[%s157] sm:$0xff] %vm224, %v220
        %226 = vst.msk [vmem:[%s157 + $0x8] sm:$0xff] %vm224, %v221
        %227 = vst.msk [vmem:[%s157 + $0x10] sm:$0xff] %vm224, %v222
        %vm228 = vcmask 242688
        %229 = vst.msk [vmem:[%s157 + $0x18] sm:$0x3f] %vm228, %v223
        %s230 = scalar_lea.vmem %s157, 32
        %231 = vst.msk [vmem:[%s230] sm:$0xff] %vm224, %v220
        %232 = vst.msk [vmem:[%s230 + $0x8] sm:$0xff] %vm224, %v221
        %233 = vst.msk [vmem:[%s230 + $0x10] sm:$0xff] %vm224, %v222
        %234 = vst.msk [vmem:[%s230 + $0x18] sm:$0x3f] %vm228, %v223
        %s235 = scalar_lea.vmem %s157, 64
        %236 = vst.msk [vmem:[%s235] sm:$0xff] %vm224, %v220
        %237 = vst.msk [vmem:[%s235 + $0x8] sm:$0xff] %vm224, %v221
        %238 = vst.msk [vmem:[%s235 + $0x10] sm:$0xff] %vm224, %v222
        %239 = vst.msk [vmem:[%s235 + $0x18] sm:$0x3f] %vm228, %v223
        %v240 = vld [vmem:[%s152] sm:$0xff]
        %v241 = vld [vmem:[%s152 + $0x8] sm:$0x7f]
        %s242 = scalar_lea.vmem %s152, 16
        %v243 = vld [vmem:[%s242] sm:$0xff]
        %v244 = vld [vmem:[%s242 + $0x8] sm:$0x7f]
        %s245 = scalar_lea.vmem %s152, 32
        %v246 = vld [vmem:[%s245] sm:$0xff]
        %v247 = vld [vmem:[%s245 + $0x8] sm:$0x7f]
        %s248 = sld [smem:[#allocation2]]
        %v249 = vstv %s248
        %v250 = vmul.f32 %v249, %v240
        %v251 = vmul.f32 %v249, %v241
        %s252 = sld [smem:[#allocation2 + $0x1]]
        %v253 = vstv %s252
        %v254 = vmul.f32 %v253, %v243
        %v255 = vmul.f32 %v253, %v244
        %v256 = vadd.f32 %v250, %v254
        %v257 = vadd.f32 %v251, %v255
        %s258 = sld [smem:[#allocation2 + $0x2]]
        %v259 = vstv %s258
        %v260 = vmul.f32 %v259, %v246
        %v261 = vmul.f32 %v259, %v247
        %v262 = vadd.f32 %v256, %v260
        %v263 = vadd.f32 %v257, %v261
        %v264 = vld [vmem:[%s157] sm:$0xff]
        %v265 = vld [vmem:[%s157 + $0x8] sm:$0x7f]
        %v266 = vadd.f32 %v264, %v262
        %v267 = vadd.f32 %v265, %v263
        %vm268 = vcmask 121856
        %269 = vst.msk [vmem:[%s157] sm:$0xff] %vm268, %v266
        %vm270 = vcmask 120832
        %271 = vst.msk [vmem:[%s157 + $0x8] sm:$0x7f] %vm270, %v267
        %s272 = sld [smem:[#allocation2 + $0x3]]
        %v273 = vstv %s272
        %v274 = vmul.f32 %v273, %v240
        %v275 = vmul.f32 %v273, %v241
        %s276 = sld [smem:[#allocation2 + $0x4]]
        %v277 = vstv %s276
        %v278 = vmul.f32 %v277, %v243
        %v279 = vmul.f32 %v277, %v244
        %v280 = vadd.f32 %v274, %v278
        %v281 = vadd.f32 %v275, %v279
        %s282 = sld [smem:[#allocation2 + $0x5]]
        %v283 = vstv %s282
        %v284 = vmul.f32 %v283, %v246
        %v285 = vmul.f32 %v283, %v247
        %v286 = vadd.f32 %v280, %v284
        %v287 = vadd.f32 %v281, %v285
        %v288 = vld [vmem:[%s230] sm:$0xff]
        %v289 = vld [vmem:[%s230 + $0x8] sm:$0x7f]
        %v290 = vadd.f32 %v288, %v286
        %v291 = vadd.f32 %v289, %v287
        %292 = vst.msk [vmem:[%s230] sm:$0xff] %vm268, %v290
        %293 = vst.msk [vmem:[%s230 + $0x8] sm:$0x7f] %vm270, %v291
        %s294 = sld [smem:[#allocation2 + $0x6]]
        %v295 = vstv %s294
        %v296 = vmul.f32 %v295, %v240
        %v297 = vmul.f32 %v295, %v241
        %s298 = sld [smem:[#allocation2 + $0x7]]
        %v299 = vstv %s298
        %v300 = vmul.f32 %v299, %v243
        %v301 = vmul.f32 %v299, %v244
        %v302 = vadd.f32 %v296, %v300
        %v303 = vadd.f32 %v297, %v301
        %s304 = sld [smem:[#allocation2 + $0x8]]
        %v305 = vstv %s304
        %v306 = vmul.f32 %v305, %v246
        %v307 = vmul.f32 %v305, %v247
        %v308 = vadd.f32 %v302, %v306
        %v309 = vadd.f32 %v303, %v307
        %v310 = vld [vmem:[%s235] sm:$0xff]
        %v311 = vld [vmem:[%s235 + $0x8] sm:$0x7f]
        %v312 = vadd.f32 %v310, %v308
        %v313 = vadd.f32 %v311, %v309
        %314 = vst.msk [vmem:[%s235] sm:$0xff] %vm268, %v312
        %315 = vst.msk [vmem:[%s235 + $0x8] sm:$0x7f] %vm270, %v313
        %s316 = sld [smem:[#allocation2 + $0x9]]
        %v317 = vstv %s316
        %v318 = vmul.f32 %v317, %v240
        %v319 = vmul.f32 %v317, %v241
        %s320 = sld [smem:[#allocation2 + $0xa]]
        %v321 = vstv %s320
        %v322 = vmul.f32 %v321, %v243
        %v323 = vmul.f32 %v321, %v244
        %v324 = vadd.f32 %v318, %v322
        %v325 = vadd.f32 %v319, %v323
        %s326 = sld [smem:[#allocation2 + $0xb]]
        %v327 = vstv %s326
        %v328 = vmul.f32 %v327, %v246
        %v329 = vmul.f32 %v327, %v247
        %v330 = vadd.f32 %v324, %v328
        %v331 = vadd.f32 %v325, %v329
        %v332 = vld [vmem:[%s157] sm:$0xff]
        %v333 = vld [vmem:[%s157 + $0x8] sm:$0x7f]
        %336 = vrot.lane.b32.xlu0 %v330, 1
        %v337 = vpop.permute.xlu0 %336
        %338 = vrot.lane.b32.xlu0 %v331, 1
        %v339 = vpop.permute.xlu0 %338
        %v342 = vadd.f32 %v332, %v337
        %v343 = vadd.f32 %v333, %v339
        %vm344 = vcmask 130056
        %345 = vst.msk [vmem:[%s157] sm:$0xff] %vm344, %v342
        %vm346 = vcmask 129032
        %347 = vst.msk [vmem:[%s157 + $0x8] sm:$0x7f] %vm346, %v343
        %s348 = sld [smem:[#allocation2 + $0xc]]
        %v349 = vstv %s348
        %v350 = vmul.f32 %v349, %v240
        %v351 = vmul.f32 %v349, %v241
        %s352 = sld [smem:[#allocation2 + $0xd]]
        %v353 = vstv %s352
        %v354 = vmul.f32 %v353, %v243
        %v355 = vmul.f32 %v353, %v244
        %v356 = vadd.f32 %v350, %v354
        %v357 = vadd.f32 %v351, %v355
        %s358 = sld [smem:[#allocation2 + $0xe]]
        %v359 = vstv %s358
        %v360 = vmul.f32 %v359, %v246
        %v361 = vmul.f32 %v359, %v247
        %v362 = vadd.f32 %v356, %v360
        %v363 = vadd.f32 %v357, %v361
        %v364 = vld [vmem:[%s230] sm:$0xff]
        %v365 = vld [vmem:[%s230 + $0x8] sm:$0x7f]
        %368 = vrot.lane.b32.xlu0 %v362, 1
        %v369 = vpop.permute.xlu0 %368
        %370 = vrot.lane.b32.xlu0 %v363, 1
        %v371 = vpop.permute.xlu0 %370
        %v374 = vadd.f32 %v364, %v369
        %v375 = vadd.f32 %v365, %v371
        %376 = vst.msk [vmem:[%s230] sm:$0xff] %vm344, %v374
        %377 = vst.msk [vmem:[%s230 + $0x8] sm:$0x7f] %vm346, %v375
        %s378 = sld [smem:[#allocation2 + $0xf]]
        %v379 = vstv %s378
        %v380 = vmul.f32 %v379, %v240
        %v381 = vmul.f32 %v379, %v241
        %s382 = sld [smem:[#allocation2 + $0x10]]
        %v383 = vstv %s382
        %v384 = vmul.f32 %v383, %v243
        %v385 = vmul.f32 %v383, %v244
        %v386 = vadd.f32 %v380, %v384
        %v387 = vadd.f32 %v381, %v385
        %s388 = sld [smem:[#allocation2 + $0x11]]
        %v389 = vstv %s388
        %v390 = vmul.f32 %v389, %v246
        %v391 = vmul.f32 %v389, %v247
        %v392 = vadd.f32 %v386, %v390
        %v393 = vadd.f32 %v387, %v391
        %v394 = vld [vmem:[%s235] sm:$0xff]
        %v395 = vld [vmem:[%s235 + $0x8] sm:$0x7f]
        %398 = vrot.lane.b32.xlu0 %v392, 1
        %v399 = vpop.permute.xlu0 %398
        %400 = vrot.lane.b32.xlu0 %v393, 1
        %v401 = vpop.permute.xlu0 %400
        %v404 = vadd.f32 %v394, %v399
        %v405 = vadd.f32 %v395, %v401
        %406 = vst.msk [vmem:[%s235] sm:$0xff] %vm344, %v404
        %407 = vst.msk [vmem:[%s235 + $0x8] sm:$0x7f] %vm346, %v405
        %s408 = sld [smem:[#allocation2 + $0x12]]
        %v409 = vstv %s408
        %v410 = vmul.f32 %v409, %v240
        %v411 = vmul.f32 %v409, %v241
        %s412 = sld [smem:[#allocation2 + $0x13]]
        %v413 = vstv %s412
        %v414 = vmul.f32 %v413, %v243
        %v415 = vmul.f32 %v413, %v244
        %v416 = vadd.f32 %v410, %v414
        %v417 = vadd.f32 %v411, %v415
        %s418 = sld [smem:[#allocation2 + $0x14]]
        %v419 = vstv %s418
        %v420 = vmul.f32 %v419, %v246
        %v421 = vmul.f32 %v419, %v247
        %v422 = vadd.f32 %v416, %v420
        %v423 = vadd.f32 %v417, %v421
        %v424 = vld [vmem:[%s157] sm:$0xff]
        %v425 = vld [vmem:[%s157 + $0x8] sm:$0x7f]
        %428 = vrot.lane.b32.xlu0 %v422, 2
        %v429 = vpop.permute.xlu0 %428
        %430 = vrot.lane.b32.xlu0 %v423, 2
        %v431 = vpop.permute.xlu0 %430
        %v434 = vadd.f32 %v424, %v429
        %v435 = vadd.f32 %v425, %v431
        %vm436 = vcmask 138256
        %437 = vst.msk [vmem:[%s157] sm:$0xff] %vm436, %v434
        %vm438 = vcmask 137232
        %439 = vst.msk [vmem:[%s157 + $0x8] sm:$0x7f] %vm438, %v435
        %s440 = sld [smem:[#allocation2 + $0x15]]
        %v441 = vstv %s440
        %v442 = vmul.f32 %v441, %v240
        %v443 = vmul.f32 %v441, %v241
        %s444 = sld [smem:[#allocation2 + $0x16]]
        %v445 = vstv %s444
        %v446 = vmul.f32 %v445, %v243
        %v447 = vmul.f32 %v445, %v244
        %v448 = vadd.f32 %v442, %v446
        %v449 = vadd.f32 %v443, %v447
        %s450 = sld [smem:[#allocation2 + $0x17]]
        %v451 = vstv %s450
        %v452 = vmul.f32 %v451, %v246
        %v453 = vmul.f32 %v451, %v247
        %v454 = vadd.f32 %v448, %v452
        %v455 = vadd.f32 %v449, %v453
        %v456 = vld [vmem:[%s230] sm:$0xff]
        %v457 = vld [vmem:[%s230 + $0x8] sm:$0x7f]
        %460 = vrot.lane.b32.xlu0 %v454, 2
        %v461 = vpop.permute.xlu0 %460
        %462 = vrot.lane.b32.xlu0 %v455, 2
        %v463 = vpop.permute.xlu0 %462
        %v466 = vadd.f32 %v456, %v461
        %v467 = vadd.f32 %v457, %v463
        %468 = vst.msk [vmem:[%s230] sm:$0xff] %vm436, %v466
        %469 = vst.msk [vmem:[%s230 + $0x8] sm:$0x7f] %vm438, %v467
        %s470 = sld [smem:[#allocation2 + $0x18]]
        %v471 = vstv %s470
        %v472 = vmul.f32 %v471, %v240
        %v473 = vmul.f32 %v471, %v241
        %s474 = sld [smem:[#allocation2 + $0x19]]
        %v475 = vstv %s474
        %v476 = vmul.f32 %v475, %v243
        %v477 = vmul.f32 %v475, %v244
        %v478 = vadd.f32 %v472, %v476
        %v479 = vadd.f32 %v473, %v477
        %s480 = sld [smem:[#allocation2 + $0x1a]]
        %v481 = vstv %s480
        %v482 = vmul.f32 %v481, %v246
        %v483 = vmul.f32 %v481, %v247
        %v484 = vadd.f32 %v478, %v482
        %v485 = vadd.f32 %v479, %v483
        %v486 = vld [vmem:[%s235] sm:$0xff]
        %v487 = vld [vmem:[%s235 + $0x8] sm:$0x7f]
        %490 = vrot.lane.b32.xlu0 %v484, 2
        %v491 = vpop.permute.xlu0 %490
        %492 = vrot.lane.b32.xlu0 %v485, 2
        %v493 = vpop.permute.xlu0 %492
        %v496 = vadd.f32 %v486, %v491
        %v497 = vadd.f32 %v487, %v493
        %498 = vst.msk [vmem:[%s235] sm:$0xff] %vm436, %v496
        %499 = vst.msk [vmem:[%s235 + $0x8] sm:$0x7f] %vm438, %v497
        %s500 = sld [smem:[#allocation2 + $0x1b]]
        %v501 = vstv %s500
        %v502 = vmul.f32 %v501, %v240
        %v503 = vmul.f32 %v501, %v241
        %s504 = sld [smem:[#allocation2 + $0x1c]]
        %v505 = vstv %s504
        %v506 = vmul.f32 %v505, %v243
        %v507 = vmul.f32 %v505, %v244
        %v508 = vadd.f32 %v502, %v506
        %v509 = vadd.f32 %v503, %v507
        %s510 = sld [smem:[#allocation2 + $0x1d]]
        %v511 = vstv %s510
        %v512 = vmul.f32 %v511, %v246
        %v513 = vmul.f32 %v511, %v247
        %v514 = vadd.f32 %v508, %v512
        %v515 = vadd.f32 %v509, %v513
        %v516 = vld [vmem:[%s157 + $0x1] sm:$0xff]
        %v517 = vld [vmem:[%s157 + $0x9] sm:$0x7f]
        %v518 = vadd.f32 %v516, %v514
        %v519 = vadd.f32 %v517, %v515
        %520 = vst.msk [vmem:[%s157 + $0x1] sm:$0xff] %vm268, %v518
        %521 = vst.msk [vmem:[%s157 + $0x9] sm:$0x7f] %vm270, %v519
        %s522 = sld [smem:[#allocation2 + $0x1e]]
        %v523 = vstv %s522
        %v524 = vmul.f32 %v523, %v240
        %v525 = vmul.f32 %v523, %v241
        %s526 = sld [smem:[#allocation2 + $0x1f]]
        %v527 = vstv %s526
        %v528 = vmul.f32 %v527, %v243
        %v529 = vmul.f32 %v527, %v244
        %v530 = vadd.f32 %v524, %v528
        %v531 = vadd.f32 %v525, %v529
        %s532 = sld [smem:[#allocation2 + $0x20]]
        %v533 = vstv %s532
        %v534 = vmul.f32 %v533, %v246
        %v535 = vmul.f32 %v533, %v247
        %v536 = vadd.f32 %v530, %v534
        %v537 = vadd.f32 %v531, %v535
        %v538 = vld [vmem:[%s230 + $0x1] sm:$0xff]
        %v539 = vld [vmem:[%s230 + $0x9] sm:$0x7f]
        %v540 = vadd.f32 %v538, %v536
        %v541 = vadd.f32 %v539, %v537
        %542 = vst.msk [vmem:[%s230 + $0x1] sm:$0xff] %vm268, %v540
        %543 = vst.msk [vmem:[%s230 + $0x9] sm:$0x7f] %vm270, %v541
        %s544 = sld [smem:[#allocation2 + $0x21]]
        %v545 = vstv %s544
        %v546 = vmul.f32 %v545, %v240
        %v547 = vmul.f32 %v545, %v241
        %s548 = sld [smem:[#allocation2 + $0x22]]
        %v549 = vstv %s548
        %v550 = vmul.f32 %v549, %v243
        %v551 = vmul.f32 %v549, %v244
        %v552 = vadd.f32 %v546, %v550
        %v553 = vadd.f32 %v547, %v551
        %s554 = sld [smem:[#allocation2 + $0x23]]
        %v555 = vstv %s554
        %v556 = vmul.f32 %v555, %v246
        %v557 = vmul.f32 %v555, %v247
        %v558 = vadd.f32 %v552, %v556
        %v559 = vadd.f32 %v553, %v557
        %v560 = vld [vmem:[%s235 + $0x1] sm:$0xff]
        %v561 = vld [vmem:[%s235 + $0x9] sm:$0x7f]
        %v562 = vadd.f32 %v560, %v558
        %v563 = vadd.f32 %v561, %v559
        %564 = vst.msk [vmem:[%s235 + $0x1] sm:$0xff] %vm268, %v562
        %565 = vst.msk [vmem:[%s235 + $0x9] sm:$0x7f] %vm270, %v563
        %s566 = sld [smem:[#allocation2 + $0x24]]
        %v567 = vstv %s566
        %v568 = vmul.f32 %v567, %v240
        %v569 = vmul.f32 %v567, %v241
        %s570 = sld [smem:[#allocation2 + $0x25]]
        %v571 = vstv %s570
        %v572 = vmul.f32 %v571, %v243
        %v573 = vmul.f32 %v571, %v244
        %v574 = vadd.f32 %v568, %v572
        %v575 = vadd.f32 %v569, %v573
        %s576 = sld [smem:[#allocation2 + $0x26]]
        %v577 = vstv %s576
        %v578 = vmul.f32 %v577, %v246
        %v579 = vmul.f32 %v577, %v247
        %v580 = vadd.f32 %v574, %v578
        %v581 = vadd.f32 %v575, %v579
        %v582 = vld [vmem:[%s157 + $0x1] sm:$0xff]
        %v583 = vld [vmem:[%s157 + $0x9] sm:$0x7f]
        %586 = vrot.lane.b32.xlu0 %v580, 1
        %v587 = vpop.permute.xlu0 %586
        %588 = vrot.lane.b32.xlu0 %v581, 1
        %v589 = vpop.permute.xlu0 %588
        %v592 = vadd.f32 %v582, %v587
        %v593 = vadd.f32 %v583, %v589
        %594 = vst.msk [vmem:[%s157 + $0x1] sm:$0xff] %vm344, %v592
        %595 = vst.msk [vmem:[%s157 + $0x9] sm:$0x7f] %vm346, %v593
        %s596 = sld [smem:[#allocation2 + $0x27]]
        %v597 = vstv %s596
        %v598 = vmul.f32 %v597, %v240
        %v599 = vmul.f32 %v597, %v241
        %s600 = sld [smem:[#allocation2 + $0x28]]
        %v601 = vstv %s600
        %v602 = vmul.f32 %v601, %v243
        %v603 = vmul.f32 %v601, %v244
        %v604 = vadd.f32 %v598, %v602
        %v605 = vadd.f32 %v599, %v603
        %s606 = sld [smem:[#allocation2 + $0x29]]
        %v607 = vstv %s606
        %v608 = vmul.f32 %v607, %v246
        %v609 = vmul.f32 %v607, %v247
        %v610 = vadd.f32 %v604, %v608
        %v611 = vadd.f32 %v605, %v609
        %v612 = vld [vmem:[%s230 + $0x1] sm:$0xff]
        %v613 = vld [vmem:[%s230 + $0x9] sm:$0x7f]
        %616 = vrot.lane.b32.xlu0 %v610, 1
        %v617 = vpop.permute.xlu0 %616
        %618 = vrot.lane.b32.xlu0 %v611, 1
        %v619 = vpop.permute.xlu0 %618
        %v622 = vadd.f32 %v612, %v617
        %v623 = vadd.f32 %v613, %v619
        %624 = vst.msk [vmem:[%s230 + $0x1] sm:$0xff] %vm344, %v622
        %625 = vst.msk [vmem:[%s230 + $0x9] sm:$0x7f] %vm346, %v623
        %s626 = sld [smem:[#allocation2 + $0x2a]]
        %v627 = vstv %s626
        %v628 = vmul.f32 %v627, %v240
        %v629 = vmul.f32 %v627, %v241
        %s630 = sld [smem:[#allocation2 + $0x2b]]
        %v631 = vstv %s630
        %v632 = vmul.f32 %v631, %v243
        %v633 = vmul.f32 %v631, %v244
        %v634 = vadd.f32 %v628, %v632
        %v635 = vadd.f32 %v629, %v633
        %s636 = sld [smem:[#allocation2 + $0x2c]]
        %v637 = vstv %s636
        %v638 = vmul.f32 %v637, %v246
        %v639 = vmul.f32 %v637, %v247
        %v640 = vadd.f32 %v634, %v638
        %v641 = vadd.f32 %v635, %v639
        %v642 = vld [vmem:[%s235 + $0x1] sm:$0xff]
        %v643 = vld [vmem:[%s235 + $0x9] sm:$0x7f]
        %646 = vrot.lane.b32.xlu0 %v640, 1
        %v647 = vpop.permute.xlu0 %646
        %648 = vrot.lane.b32.xlu0 %v641, 1
        %v649 = vpop.permute.xlu0 %648
        %v652 = vadd.f32 %v642, %v647
        %v653 = vadd.f32 %v643, %v649
        %654 = vst.msk [vmem:[%s235 + $0x1] sm:$0xff] %vm344, %v652
        %655 = vst.msk [vmem:[%s235 + $0x9] sm:$0x7f] %vm346, %v653
        %s656 = sld [smem:[#allocation2 + $0x2d]]
        %v657 = vstv %s656
        %v658 = vmul.f32 %v657, %v240
        %v659 = vmul.f32 %v657, %v241
        %s660 = sld [smem:[#allocation2 + $0x2e]]
        %v661 = vstv %s660
        %v662 = vmul.f32 %v661, %v243
        %v663 = vmul.f32 %v661, %v244
        %v664 = vadd.f32 %v658, %v662
        %v665 = vadd.f32 %v659, %v663
        %s666 = sld [smem:[#allocation2 + $0x2f]]
        %v667 = vstv %s666
        %v668 = vmul.f32 %v667, %v246
        %v669 = vmul.f32 %v667, %v247
        %v670 = vadd.f32 %v664, %v668
        %v671 = vadd.f32 %v665, %v669
        %v672 = vld [vmem:[%s157 + $0x1] sm:$0xff]
        %v673 = vld [vmem:[%s157 + $0x9] sm:$0x7f]
        %676 = vrot.lane.b32.xlu0 %v670, 2
        %v677 = vpop.permute.xlu0 %676
        %678 = vrot.lane.b32.xlu0 %v671, 2
        %v679 = vpop.permute.xlu0 %678
        %v682 = vadd.f32 %v672, %v677
        %v683 = vadd.f32 %v673, %v679
        %684 = vst.msk [vmem:[%s157 + $0x1] sm:$0xff] %vm436, %v682
        %685 = vst.msk [vmem:[%s157 + $0x9] sm:$0x7f] %vm438, %v683
        %s686 = sld [smem:[#allocation2 + $0x30]]
        %v687 = vstv %s686
        %v688 = vmul.f32 %v687, %v240
        %v689 = vmul.f32 %v687, %v241
        %s690 = sld [smem:[#allocation2 + $0x31]]
        %v691 = vstv %s690
        %v692 = vmul.f32 %v691, %v243
        %v693 = vmul.f32 %v691, %v244
        %v694 = vadd.f32 %v688, %v692
        %v695 = vadd.f32 %v689, %v693
        %s696 = sld [smem:[#allocation2 + $0x32]]
        %v697 = vstv %s696
        %v698 = vmul.f32 %v697, %v246
        %v699 = vmul.f32 %v697, %v247
        %v700 = vadd.f32 %v694, %v698
        %v701 = vadd.f32 %v695, %v699
        %v702 = vld [vmem:[%s230 + $0x1] sm:$0xff]
        %v703 = vld [vmem:[%s230 + $0x9] sm:$0x7f]
        %706 = vrot.lane.b32.xlu0 %v700, 2
        %v707 = vpop.permute.xlu0 %706
        %708 = vrot.lane.b32.xlu0 %v701, 2
        %v709 = vpop.permute.xlu0 %708
        %v712 = vadd.f32 %v702, %v707
        %v713 = vadd.f32 %v703, %v709
        %714 = vst.msk [vmem:[%s230 + $0x1] sm:$0xff] %vm436, %v712
        %715 = vst.msk [vmem:[%s230 + $0x9] sm:$0x7f] %vm438, %v713
        %s716 = sld [smem:[#allocation2 + $0x33]]
        %v717 = vstv %s716
        %v718 = vmul.f32 %v717, %v240
        %v719 = vmul.f32 %v717, %v241
        %s720 = sld [smem:[#allocation2 + $0x34]]
        %v721 = vstv %s720
        %v722 = vmul.f32 %v721, %v243
        %v723 = vmul.f32 %v721, %v244
        %v724 = vadd.f32 %v718, %v722
        %v725 = vadd.f32 %v719, %v723
        %s726 = sld [smem:[#allocation2 + $0x35]]
        %v727 = vstv %s726
        %v728 = vmul.f32 %v727, %v246
        %v729 = vmul.f32 %v727, %v247
        %v730 = vadd.f32 %v724, %v728
        %v731 = vadd.f32 %v725, %v729
        %v732 = vld [vmem:[%s235 + $0x1] sm:$0xff]
        %v733 = vld [vmem:[%s235 + $0x9] sm:$0x7f]
        %736 = vrot.lane.b32.xlu0 %v730, 2
        %v737 = vpop.permute.xlu0 %736
        %738 = vrot.lane.b32.xlu0 %v731, 2
        %v739 = vpop.permute.xlu0 %738
        %v742 = vadd.f32 %v732, %v737
        %v743 = vadd.f32 %v733, %v739
        %744 = vst.msk [vmem:[%s235 + $0x1] sm:$0xff] %vm436, %v742
        %745 = vst.msk [vmem:[%s235 + $0x9] sm:$0x7f] %vm438, %v743
        %s746 = sld [smem:[#allocation2 + $0x36]]
        %v747 = vstv %s746
        %v748 = vmul.f32 %v747, %v240
        %v749 = vmul.f32 %v747, %v241
        %s750 = sld [smem:[#allocation2 + $0x37]]
        %v751 = vstv %s750
        %v752 = vmul.f32 %v751, %v243
        %v753 = vmul.f32 %v751, %v244
        %v754 = vadd.f32 %v748, %v752
        %v755 = vadd.f32 %v749, %v753
        %s756 = sld [smem:[#allocation2 + $0x38]]
        %v757 = vstv %s756
        %v758 = vmul.f32 %v757, %v246
        %v759 = vmul.f32 %v757, %v247
        %v760 = vadd.f32 %v754, %v758
        %v761 = vadd.f32 %v755, %v759
        %v762 = vld [vmem:[%s157 + $0x2] sm:$0xff]
        %v763 = vld [vmem:[%s157 + $0xa] sm:$0x7f]
        %v764 = vadd.f32 %v762, %v760
        %v765 = vadd.f32 %v763, %v761
        %766 = vst.msk [vmem:[%s157 + $0x2] sm:$0xff] %vm268, %v764
        %767 = vst.msk [vmem:[%s157 + $0xa] sm:$0x7f] %vm270, %v765
        %s768 = sld [smem:[#allocation2 + $0x39]]
        %v769 = vstv %s768
        %v770 = vmul.f32 %v769, %v240
        %v771 = vmul.f32 %v769, %v241
        %s772 = sld [smem:[#allocation2 + $0x3a]]
        %v773 = vstv %s772
        %v774 = vmul.f32 %v773, %v243
        %v775 = vmul.f32 %v773, %v244
        %v776 = vadd.f32 %v770, %v774
        %v777 = vadd.f32 %v771, %v775
        %s778 = sld [smem:[#allocation2 + $0x3b]]
        %v779 = vstv %s778
        %v780 = vmul.f32 %v779, %v246
        %v781 = vmul.f32 %v779, %v247
        %v782 = vadd.f32 %v776, %v780
        %v783 = vadd.f32 %v777, %v781
        %v784 = vld [vmem:[%s230 + $0x2] sm:$0xff]
        %v785 = vld [vmem:[%s230 + $0xa] sm:$0x7f]
        %v786 = vadd.f32 %v784, %v782
        %v787 = vadd.f32 %v785, %v783
        %788 = vst.msk [vmem:[%s230 + $0x2] sm:$0xff] %vm268, %v786
        %789 = vst.msk [vmem:[%s230 + $0xa] sm:$0x7f] %vm270, %v787
        %s790 = sld [smem:[#allocation2 + $0x3c]]
        %v791 = vstv %s790
        %v792 = vmul.f32 %v791, %v240
        %v793 = vmul.f32 %v791, %v241
        %s794 = sld [smem:[#allocation2 + $0x3d]]
        %v795 = vstv %s794
        %v796 = vmul.f32 %v795, %v243
        %v797 = vmul.f32 %v795, %v244
        %v798 = vadd.f32 %v792, %v796
        %v799 = vadd.f32 %v793, %v797
        %s800 = sld [smem:[#allocation2 + $0x3e]]
        %v801 = vstv %s800
        %v802 = vmul.f32 %v801, %v246
        %v803 = vmul.f32 %v801, %v247
        %v804 = vadd.f32 %v798, %v802
        %v805 = vadd.f32 %v799, %v803
        %v806 = vld [vmem:[%s235 + $0x2] sm:$0xff]
        %v807 = vld [vmem:[%s235 + $0xa] sm:$0x7f]
        %v808 = vadd.f32 %v806, %v804
        %v809 = vadd.f32 %v807, %v805
        %810 = vst.msk [vmem:[%s235 + $0x2] sm:$0xff] %vm268, %v808
        %811 = vst.msk [vmem:[%s235 + $0xa] sm:$0x7f] %vm270, %v809
        %s812 = sld [smem:[#allocation2 + $0x3f]]
        %v813 = vstv %s812
        %v814 = vmul.f32 %v813, %v240
        %v815 = vmul.f32 %v813, %v241
        %s816 = sld [smem:[#allocation2 + $0x40]]
        %v817 = vstv %s816
        %v818 = vmul.f32 %v817, %v243
        %v819 = vmul.f32 %v817, %v244
        %v820 = vadd.f32 %v814, %v818
        %v821 = vadd.f32 %v815, %v819
        %s822 = sld [smem:[#allocation2 + $0x41]]
        %v823 = vstv %s822
        %v824 = vmul.f32 %v823, %v246
        %v825 = vmul.f32 %v823, %v247
        %v826 = vadd.f32 %v820, %v824
        %v827 = vadd.f32 %v821, %v825
        %v828 = vld [vmem:[%s157 + $0x2] sm:$0xff]
        %v829 = vld [vmem:[%s157 + $0xa] sm:$0x7f]
        %832 = vrot.lane.b32.xlu0 %v826, 1
        %v833 = vpop.permute.xlu0 %832
        %834 = vrot.lane.b32.xlu0 %v827, 1
        %v835 = vpop.permute.xlu0 %834
        %v838 = vadd.f32 %v828, %v833
        %v839 = vadd.f32 %v829, %v835
        %840 = vst.msk [vmem:[%s157 + $0x2] sm:$0xff] %vm344, %v838
        %841 = vst.msk [vmem:[%s157 + $0xa] sm:$0x7f] %vm346, %v839
        %s842 = sld [smem:[#allocation2 + $0x42]]
        %v843 = vstv %s842
        %v844 = vmul.f32 %v843, %v240
        %v845 = vmul.f32 %v843, %v241
        %s846 = sld [smem:[#allocation2 + $0x43]]
        %v847 = vstv %s846
        %v848 = vmul.f32 %v847, %v243
        %v849 = vmul.f32 %v847, %v244
        %v850 = vadd.f32 %v844, %v848
        %v851 = vadd.f32 %v845, %v849
        %s852 = sld [smem:[#allocation2 + $0x44]]
        %v853 = vstv %s852
        %v854 = vmul.f32 %v853, %v246
        %v855 = vmul.f32 %v853, %v247
        %v856 = vadd.f32 %v850, %v854
        %v857 = vadd.f32 %v851, %v855
        %v858 = vld [vmem:[%s230 + $0x2] sm:$0xff]
        %v859 = vld [vmem:[%s230 + $0xa] sm:$0x7f]
        %862 = vrot.lane.b32.xlu0 %v856, 1
        %v863 = vpop.permute.xlu0 %862
        %864 = vrot.lane.b32.xlu0 %v857, 1
        %v865 = vpop.permute.xlu0 %864
        %v868 = vadd.f32 %v858, %v863
        %v869 = vadd.f32 %v859, %v865
        %870 = vst.msk [vmem:[%s230 + $0x2] sm:$0xff] %vm344, %v868
        %871 = vst.msk [vmem:[%s230 + $0xa] sm:$0x7f] %vm346, %v869
        %s872 = sld [smem:[#allocation2 + $0x45]]
        %v873 = vstv %s872
        %v874 = vmul.f32 %v873, %v240
        %v875 = vmul.f32 %v873, %v241
        %s876 = sld [smem:[#allocation2 + $0x46]]
        %v877 = vstv %s876
        %v878 = vmul.f32 %v877, %v243
        %v879 = vmul.f32 %v877, %v244
        %v880 = vadd.f32 %v874, %v878
        %v881 = vadd.f32 %v875, %v879
        %s882 = sld [smem:[#allocation2 + $0x47]]
        %v883 = vstv %s882
        %v884 = vmul.f32 %v883, %v246
        %v885 = vmul.f32 %v883, %v247
        %v886 = vadd.f32 %v880, %v884
        %v887 = vadd.f32 %v881, %v885
        %v888 = vld [vmem:[%s235 + $0x2] sm:$0xff]
        %v889 = vld [vmem:[%s235 + $0xa] sm:$0x7f]
        %892 = vrot.lane.b32.xlu0 %v886, 1
        %v893 = vpop.permute.xlu0 %892
        %894 = vrot.lane.b32.xlu0 %v887, 1
        %v895 = vpop.permute.xlu0 %894
        %v898 = vadd.f32 %v888, %v893
        %v899 = vadd.f32 %v889, %v895
        %900 = vst.msk [vmem:[%s235 + $0x2] sm:$0xff] %vm344, %v898
        %901 = vst.msk [vmem:[%s235 + $0xa] sm:$0x7f] %vm346, %v899
        %s902 = sld [smem:[#allocation2 + $0x48]]
        %v903 = vstv %s902
        %v904 = vmul.f32 %v903, %v240
        %v905 = vmul.f32 %v903, %v241
        %s906 = sld [smem:[#allocation2 + $0x49]]
        %v907 = vstv %s906
        %v908 = vmul.f32 %v907, %v243
        %v909 = vmul.f32 %v907, %v244
        %v910 = vadd.f32 %v904, %v908
        %v911 = vadd.f32 %v905, %v909
        %s912 = sld [smem:[#allocation2 + $0x4a]]
        %v913 = vstv %s912
        %v914 = vmul.f32 %v913, %v246
        %v915 = vmul.f32 %v913, %v247
        %v916 = vadd.f32 %v910, %v914
        %v917 = vadd.f32 %v911, %v915
        %v918 = vld [vmem:[%s157 + $0x2] sm:$0xff]
        %v919 = vld [vmem:[%s157 + $0xa] sm:$0x7f]
        %922 = vrot.lane.b32.xlu0 %v916, 2
        %v923 = vpop.permute.xlu0 %922
        %924 = vrot.lane.b32.xlu0 %v917, 2
        %v925 = vpop.permute.xlu0 %924
        %v928 = vadd.f32 %v918, %v923
        %v929 = vadd.f32 %v919, %v925
        %930 = vst.msk [vmem:[%s157 + $0x2] sm:$0xff] %vm436, %v928
        %931 = vst.msk [vmem:[%s157 + $0xa] sm:$0x7f] %vm438, %v929
        %s932 = sld [smem:[#allocation2 + $0x4b]]
        %v933 = vstv %s932
        %v934 = vmul.f32 %v933, %v240
        %v935 = vmul.f32 %v933, %v241
        %s936 = sld [smem:[#allocation2 + $0x4c]]
        %v937 = vstv %s936
        %v938 = vmul.f32 %v937, %v243
        %v939 = vmul.f32 %v937, %v244
        %v940 = vadd.f32 %v934, %v938
        %v941 = vadd.f32 %v935, %v939
        %s942 = sld [smem:[#allocation2 + $0x4d]]
        %v943 = vstv %s942
        %v944 = vmul.f32 %v943, %v246
        %v945 = vmul.f32 %v943, %v247
        %v946 = vadd.f32 %v940, %v944
        %v947 = vadd.f32 %v941, %v945
        %v948 = vld [vmem:[%s230 + $0x2] sm:$0xff]
        %v949 = vld [vmem:[%s230 + $0xa] sm:$0x7f]
        %952 = vrot.lane.b32.xlu0 %v946, 2
        %v953 = vpop.permute.xlu0 %952
        %954 = vrot.lane.b32.xlu0 %v947, 2
        %v955 = vpop.permute.xlu0 %954
        %v958 = vadd.f32 %v948, %v953
        %v959 = vadd.f32 %v949, %v955
        %960 = vst.msk [vmem:[%s230 + $0x2] sm:$0xff] %vm436, %v958
        %961 = vst.msk [vmem:[%s230 + $0xa] sm:$0x7f] %vm438, %v959
        %s962 = sld [smem:[#allocation2 + $0x4e]]
        %v963 = vstv %s962
        %v964 = vmul.f32 %v963, %v240
        %v965 = vmul.f32 %v963, %v241
        %s966 = sld [smem:[#allocation2 + $0x4f]]
        %v967 = vstv %s966
        %v968 = vmul.f32 %v967, %v243
        %v969 = vmul.f32 %v967, %v244
        %v970 = vadd.f32 %v964, %v968
        %v971 = vadd.f32 %v965, %v969
        %s972 = sld [smem:[#allocation2 + $0x50]]
        %v973 = vstv %s972
        %v974 = vmul.f32 %v973, %v246
        %v975 = vmul.f32 %v973, %v247
        %v976 = vadd.f32 %v970, %v974
        %v977 = vadd.f32 %v971, %v975
        %v978 = vld [vmem:[%s235 + $0x2] sm:$0xff]
        %v979 = vld [vmem:[%s235 + $0xa] sm:$0x7f]
        %982 = vrot.lane.b32.xlu0 %v976, 2
        %v983 = vpop.permute.xlu0 %982
        %984 = vrot.lane.b32.xlu0 %v977, 2
        %v985 = vpop.permute.xlu0 %984
        %v988 = vadd.f32 %v978, %v983
        %v989 = vadd.f32 %v979, %v985
        %990 = vst.msk [vmem:[%s235 + $0x2] sm:$0xff] %vm436, %v988
        %991 = vst.msk [vmem:[%s235 + $0xa] sm:$0x7f] %vm438, %v989
        %p992 = scmp.lt.s32.totalorder %s14, 1
        %s993 = scalar_select %p992, %s14, 1
        %s994 = smul.addr %s993, 12
        %s995 = smul.addr %s994, 8
        %s996 = scalar_lea.vmem %s2, %s995
        // Predicated region
        $region33: #{conv_transpose2d_forward.1} parent=27 // pred_check
          %p997 = pneg %p79
        $region34: #{conv_transpose2d_forward.1} parent=27 // pred_check_branch
          %999 = sbr.rel (%p997) target = $region36
        $region35: #{conv_transpose2d_forward.1} parent=27 // pred_region
          _
        $region36: #{conv_transpose2d_forward.1} parent=27 // pred_fallthru
          _
      $region28: #{conv_transpose2d_forward.1} parent=5 // pred_fallthru
        _
      %p1000 = scmp.le.s32.totalorder 2, %s9
      // Predicated region
      $region37: #{conv_transpose2d_forward.1} parent=5 // pred_check
        %p1001 = pneg %p1000
      $region38: #{conv_transpose2d_forward.1} parent=5 // pred_check_branch
        %1003 = sbr.rel (%p1001) target = $region40
      $region39: #{conv_transpose2d_forward.1} parent=5 // pred_region
        %s1004 = ssub.s32 %s9, 2
        // Predicated region
        $region41: #{conv_transpose2d_forward.1} parent=39 // pred_check
          %p1005 = pneg %p85
        $region42: #{conv_transpose2d_forward.1} parent=39 // pred_check_branch
          %1007 = sbr.rel (%p1005) target = $region44
        $region43: #{conv_transpose2d_forward.1} parent=39 // pred_region
          %p1008 = scmp.lt.s32.totalorder %s15, 1
          %s1009 = scalar_select %p1008, %s15, 1
          %s1010 = smul.addr %s1009, 12
          %s1011 = smul.addr %s1010, 8
          %s1012 = scalar_lea.vmem %s2, %s1011
        $region44: #{conv_transpose2d_forward.1} parent=39 // pred_fallthru
          _
      $region40: #{conv_transpose2d_forward.1} parent=5 // pred_fallthru
        _
    $region6: #{conv_transpose2d_forward.1} parent=1 // loop_footer
      %s13 = sadd.s32 1, %s9
    $region7: #{conv_transpose2d_forward.1} parent=1 // loop_footer_branch
      %8 = sbr.rel target = $region3
    $region8: #{conv_transpose2d_forward.1} parent=1 // loop_exit
      _
    %1013 = vsyncpa [#allocation3], 1
    %s1014 = scalar_lea.sflag [#allocation3], 1
    %1015 = vsyncpa %s1014, 1

</llo_original>
